<compile_context>
chip_gen: v7x
topology: tpu7x:2x2x1
jax: 0.10.0
libtpu: 0.0.40
codegen_flags: <defaults>
</compile_context>

<pallas_src>
import functools

import jax
import jax.numpy as jnp
import numpy as np
from jax import lax
from jax.experimental import pallas as pl
from jax.experimental.pallas import tpu as pltpu

_TB = 8  # time block = one full sublane tile of hidden rows per store


def _lstm_kernel(seq_ref, *refs, num_layers):
    L = num_layers
    w_ih_refs = refs[:L]
    w_hh_ref, b_ref, w_lin_ref, b_lin_ref = refs[L:L + 4]
    pred_ref, hn_ref, cn_ref = refs[L + 4:L + 7]
    layer_out, gates_x = refs[L + 7:L + 9]

    T = layer_out.shape[0]
    H = hn_ref.shape[1]
    n_full = T // _TB
    tail = T - n_full * _TB
    # Trace-time choice of activation strategy (see header).
    full_width_act = (4 * H) <= 128

    def run_layer(l, x_ref, w_ih_ref):
        # Hoisted once per layer.
        w_hh = w_hh_ref[l]                      # (H, 4H)  static layer index
        b = b_ref[l:l + 1, :]                   # (1, 4H)

        # Input-to-hidden contribution for all timesteps at once (MXU matmul).
        gates_x[...] = jnp.dot(x_ref[...], w_ih_ref[...],
                               preferred_element_type=jnp.float32) + b

        def cell(g_row, h, c):
            # Recurrent contribution: (1,H) x (H,4H) on the MXU.
            g = g_row + jnp.dot(h, w_hh, preferred_element_type=jnp.float32)
            if full_width_act:
                # One sigmoid + one tanh over the whole 4H lanes (single vreg),
                # then static lane slices.
                sg = jax.nn.sigmoid(g)
                tg = jnp.tanh(g)
                i_g = sg[:, 0:H]
                f_g = sg[:, H:2 * H]
                o_g = sg[:, 3 * H:4 * H]
                g_g = tg[:, 2 * H:3 * H]
            else:
                # Exact-slice transcendentals: EUP work stays ~4H lanes/step.
                sif = jax.nn.sigmoid(g[:, 0:2 * H])
                i_g = sif[:, 0:H]
                f_g = sif[:, H:2 * H]
                g_g = jnp.tanh(g[:, 2 * H:3 * H])
                o_g = jax.nn.sigmoid(g[:, 3 * H:4 * H])
            c = f_g * c + i_g * g_g
            h = o_g * jnp.tanh(c)
            return h, c

        def block(blk, carry):
            h, c = carry
            base = pl.multiple_of(blk * _TB, _TB)
            g_blk = gates_x[pl.ds(base, _TB), :]        # one dense (TB,4H) load
            hs = []
            for j in range(_TB):                        # unrolled inner steps
                h, c = cell(g_blk[j:j + 1, :], h, c)
                hs.append(h)
            # One full-sublane store per block instead of 8 masked 1-row stores.
            layer_out[pl.ds(base, _TB), :] = jnp.concatenate(hs, axis=0)
            return h, c

        h = jnp.zeros((1, H), jnp.float32)
        c = jnp.zeros((1, H), jnp.float32)
        if 0 < n_full <= 16:
            h, c = lax.fori_loop(0, n_full, block, (h, c), unroll=True)
        elif n_full > 16:
            h, c = lax.fori_loop(0, n_full, block, (h, c))

        # Tail (< TB steps), fully unrolled with static indices.
        for j in range(tail):
            t = n_full * _TB + j
            h, c = cell(gates_x[t:t + 1, :], h, c)
            layer_out[t:t + 1, :] = h

        hn_ref[l:l + 1, :] = h
        cn_ref[l:l + 1, :] = c

    # Layer 0 consumes the raw sequence; later layers consume layer_out
    # (its precompute read happens before it is overwritten).
    run_layer(0, seq_ref, w_ih_refs[0])
    for l in range(1, L):
        run_layer(l, layer_out, w_ih_refs[l])

    # Final Linear on the last layer's outputs (lane-dense padded columns).
    pred_ref[...] = jnp.dot(layer_out[...], w_lin_ref[...],
                            preferred_element_type=jnp.float32) + b_lin_ref[...]


def _padded_bytes(shape):
    """f32 bytes of a >=2-D array after (8,128) layout padding."""
    lead = int(np.prod(shape[:-2])) if len(shape) > 2 else 1
    rows = -(-shape[-2] // 8) * 8
    cols = -(-shape[-1] // 128) * 128
    return lead * rows * cols * 4


def lstm_model_forward(seq, params):
    """Pallas wrapper reproducing LSTMmodel.forward: returns (pred, (h_n, c_n))."""
    seq = seq.astype(jnp.float32)
    T, input_size = seq.shape
    L = len(params["w_ih"])
    H = params["w_hh"][0].shape[1]
    out_size = params["w_lin"].shape[0]
    out_pad = ((out_size + 127) // 128) * 128

    # Pre-transpose so every in-kernel dot is a plain row-major matmul.
    w_ih_t = [params["w_ih"][l].T for l in range(L)]                # (in_l, 4H)
    w_hh_t = jnp.stack([params["w_hh"][l].T for l in range(L)])     # (L, H, 4H)
    b_all = jnp.stack([params["b_ih"][l] + params["b_hh"][l]
                       for l in range(L)])                          # (L, 4H)
    # Lane-dense final Linear: pad output columns to a multiple of 128.
    w_lin_t = jnp.zeros((H, out_pad), jnp.float32).at[:, :out_size].set(
        params["w_lin"].T)
    b_lin = jnp.zeros((1, out_pad), jnp.float32).at[0, :out_size].set(
        params["b_lin"])

    kernel = functools.partial(_lstm_kernel, num_layers=L)
    vmem = pl.BlockSpec(memory_space=pltpu.MemorySpace.VMEM)

    # Explicit VMEM budget: all inputs + outputs + scratch, padded, with margin.
    total = (_padded_bytes(seq.shape)
             + sum(_padded_bytes(w.shape) for w in w_ih_t)
             + _padded_bytes(w_hh_t.shape) + _padded_bytes(b_all.shape)
             + _padded_bytes(w_lin_t.shape) + _padded_bytes(b_lin.shape)
             + _padded_bytes((T, out_pad)) + 2 * _padded_bytes((L, H))
             + _padded_bytes((T, H)) + _padded_bytes((T, 4 * H)))
    vmem_limit = int(min(max(2 * total + (2 << 20), 8 << 20), 64 << 20))

    pred, h_n, c_n = pl.pallas_call(
        kernel,
        out_shape=(
            jax.ShapeDtypeStruct((T, out_pad), jnp.float32),
            jax.ShapeDtypeStruct((L, H), jnp.float32),
            jax.ShapeDtypeStruct((L, H), jnp.float32),
        ),
        in_specs=[vmem] * (1 + L + 4),
        out_specs=(vmem, vmem, vmem),
        scratch_shapes=[
            pltpu.VMEM((T, H), jnp.float32),        # current layer outputs
            pltpu.VMEM((T, 4 * H), jnp.float32),    # x @ W_ih^T + b, all steps
        ],
        compiler_params=pltpu.CompilerParams(vmem_limit_bytes=vmem_limit),
    )(seq, *w_ih_t, w_hh_t, b_all, w_lin_t, b_lin)

    return pred[:, :out_size], (h_n, c_n)


def init_params(key, input_size, hidden_size, out_size, layers):
    """Deterministic parameter init mirroring nn.LSTM / nn.Linear shapes."""
    k = 1.0 / np.sqrt(hidden_size)
    params = {"w_ih": [], "w_hh": [], "b_ih": [], "b_hh": []}
    for l in range(layers):
        in_dim = input_size if l == 0 else hidden_size
        key, k1, k2, k3, k4 = jax.random.split(key, 5)
        params["w_ih"].append(
            jax.random.uniform(k1, (4 * hidden_size, in_dim), jnp.float32, -k, k))
        params["w_hh"].append(
            jax.random.uniform(k2, (4 * hidden_size, hidden_size), jnp.float32, -k, k))
        params["b_ih"].append(
            jax.random.uniform(k3, (4 * hidden_size,), jnp.float32, -k, k))
        params["b_hh"].append(
            jax.random.uniform(k4, (4 * hidden_size,), jnp.float32, -k, k))
    kl = 1.0 / np.sqrt(hidden_size)
    key, k5, k6 = jax.random.split(key, 3)
    params["w_lin"] = jax.random.uniform(
        k5, (out_size, hidden_size), jnp.float32, -kl, kl)
    params["b_lin"] = jax.random.uniform(k6, (out_size,), jnp.float32, -kl, kl)
    return params


def ref_forward(seq, params):
    """Pure-JAX reference with identical PyTorch LSTM semantics."""
    L = len(params["w_ih"])
    H = params["w_hh"][0].shape[1]
    x = seq
    hs, cs = [], []
    for l in range(L):
        w_ih, w_hh = params["w_ih"][l], params["w_hh"][l]
        b = params["b_ih"][l] + params["b_hh"][l]
        h = jnp.zeros((H,), jnp.float32)
        c = jnp.zeros((H,), jnp.float32)
        outs = []
        for t in range(x.shape[0]):
            g = x[t] @ w_ih.T + h @ w_hh.T + b
            i = jax.nn.sigmoid(g[0:H])
            f = jax.nn.sigmoid(g[H:2 * H])
            gg = jnp.tanh(g[2 * H:3 * H])
            o = jax.nn.sigmoid(g[3 * H:4 * H])
            c = f * c + i * gg
            h = o * jnp.tanh(c)
            outs.append(h)
        x = jnp.stack(outs)
        hs.append(h)
        cs.append(c)
    pred = x @ params["w_lin"].T + params["b_lin"]
    return pred, jnp.stack(hs), jnp.stack(cs)


if __name__ == "__main__":
    input_size, hidden_size, out_size, layers = 4, 32, 4, 2
    seq_len = 8

    key = jax.random.PRNGKey(0)
    key, kseq = jax.random.split(key)
    seq = jax.random.normal(kseq, (seq_len, input_size), jnp.float32)
    params = init_params(key, input_size, hidden_size, out_size, layers)

    pred, (h_n, c_n) = lstm_model_forward(seq, params)
    jax.block_until_ready((pred, h_n, c_n))

    pred_r, hn_r, cn_r = ref_forward(seq, params)
    np.testing.assert_allclose(np.asarray(pred), np.asarray(pred_r),
                               rtol=1e-5, atol=1e-5)
    np.testing.assert_allclose(np.asarray(h_n), np.asarray(hn_r),
                               rtol=1e-5, atol=1e-5)
    np.testing.assert_allclose(np.asarray(c_n), np.asarray(cn_r),
                               rtol=1e-5, atol=1e-5)

    print("KERNEL_OK")
</pallas_src>

<mosaic_0001>
module attributes {stable_mosaic.version = 11 : i64} {
  func.func @_lstm_kernel(%arg0: memref<8x4xf32, #tpu.memory_space<vmem>>, %arg1: memref<4x128xf32, #tpu.memory_space<vmem>>, %arg2: memref<32x128xf32, #tpu.memory_space<vmem>>, %arg3: memref<2x32x128xf32, #tpu.memory_space<vmem>>, %arg4: memref<2x128xf32, #tpu.memory_space<vmem>>, %arg5: memref<32x128xf32, #tpu.memory_space<vmem>>, %arg6: memref<1x128xf32, #tpu.memory_space<vmem>>, %arg7: memref<8x128xf32, #tpu.memory_space<vmem>>, %arg8: memref<2x32xf32, #tpu.memory_space<vmem>>, %arg9: memref<2x32xf32, #tpu.memory_space<vmem>>, %arg10: memref<8x32xf32, #tpu.memory_space<vmem>>, %arg11: memref<8x128xf32, #tpu.memory_space<vmem>>) attributes {dimension_semantics = [], scalar_prefetch = 0 : i64, scratch_operands = 2 : i64, tpu.core_type = #tpu.core_type<tc>} {
    %c0 = arith.constant 0 : index
    %c0_0 = arith.constant 0 : index
    %c0_1 = arith.constant 0 : index
    %0 = vector.load %arg3[%c0, %c0_0, %c0_1] : memref<2x32x128xf32, #tpu.memory_space<vmem>>, vector<1x32x128xf32>
    %1 = vector.shape_cast %0 : vector<1x32x128xf32> to vector<32x128xf32>
    %c0_2 = arith.constant 0 : index
    %c0_3 = arith.constant 0 : index
    %2 = vector.load %arg4[%c0_2, %c0_3] : memref<2x128xf32, #tpu.memory_space<vmem>>, vector<1x128xf32>
    %c0_4 = arith.constant 0 : index
    %c0_5 = arith.constant 0 : index
    %3 = vector.load %arg0[%c0_4, %c0_5] : memref<8x4xf32, #tpu.memory_space<vmem>>, vector<8x4xf32>
    %c0_6 = arith.constant 0 : index
    %c0_7 = arith.constant 0 : index
    %4 = vector.load %arg1[%c0_6, %c0_7] : memref<4x128xf32, #tpu.memory_space<vmem>>, vector<4x128xf32>
    %cst = arith.constant dense<0.000000e+00> : vector<8x128xf32>
    %5 = tpu.matmul %3, %4, %cst {dimension_numbers = #tpu.dot_dimension_numbers<[1], [0], [0], [1], [0, 0, 1, 1], [], []>} : vector<8x4xf32>, vector<4x128xf32>, vector<8x128xf32> -> vector<8x128xf32>
    %6 = vector.broadcast %2 : vector<1x128xf32> to vector<8x128xf32>
    %7 = arith.addf %5, %6 : vector<8x128xf32>
    %c0_8 = arith.constant 0 : index
    %c0_9 = arith.constant 0 : index
    %8 = vector.load %arg11[%c0_8, %c0_9] : memref<8x128xf32, #tpu.memory_space<vmem>>, vector<8x128xf32>
    tpu.vector_store %arg11[%c0_8, %c0_9], %7 {strides = array<i32>} : memref<8x128xf32, #tpu.memory_space<vmem>>, vector<8x128xf32>,
    %cst_10 = arith.constant 0.000000e+00 : f32
    %9 = vector.broadcast %cst_10 : f32 to vector<1x32xf32>
    %cst_11 = arith.constant 0.000000e+00 : f32
    %10 = vector.broadcast %cst_11 : f32 to vector<1x32xf32>
    %c0_i32 = arith.constant 0 : i32
    %c8_i32 = arith.constant 8 : i32
    %11 = arith.muli %c0_i32, %c8_i32 : i32
    %12 = tpu.assume_multiple %11, 8 : i32
    %13 = arith.index_cast %12 : i32 to index
    %c0_12 = arith.constant 0 : index
    %14 = vector.load %arg11[%13, %c0_12] : memref<8x128xf32, #tpu.memory_space<vmem>>, vector<8x128xf32>
    %15 = vector.extract_strided_slice %14 {offsets = [0, 0], sizes = [1, 128], strides = [1, 1]} : vector<8x128xf32> to vector<1x128xf32>
    %cst_13 = arith.constant dense<0.000000e+00> : vector<1x128xf32>
    %16 = tpu.matmul %9, %1, %cst_13 {dimension_numbers = #tpu.dot_dimension_numbers<[1], [0], [0], [1], [0, 0, 1, 1], [], []>} : vector<1x32xf32>, vector<32x128xf32>, vector<1x128xf32> -> vector<1x128xf32>
    %17 = arith.addf %15, %16 : vector<1x128xf32>
    %18 = arith.negf %17 : vector<1x128xf32>
    %19 = math.exp %18 : vector<1x128xf32>
    %cst_14 = arith.constant 1.000000e+00 : f32
    %20 = vector.broadcast %cst_14 : f32 to vector<1x128xf32>
    %21 = arith.addf %20, %19 : vector<1x128xf32>
    %22 = arith.divf %20, %21 : vector<1x128xf32>
    %23 = math.tanh %17 : vector<1x128xf32>
    %24 = vector.extract_strided_slice %22 {offsets = [0, 0], sizes = [1, 32], strides = [1, 1]} : vector<1x128xf32> to vector<1x32xf32>
    %25 = vector.extract_strided_slice %22 {offsets = [0, 32], sizes = [1, 32], strides = [1, 1]} : vector<1x128xf32> to vector<1x32xf32>
    %26 = vector.extract_strided_slice %22 {offsets = [0, 96], sizes = [1, 32], strides = [1, 1]} : vector<1x128xf32> to vector<1x32xf32>
    %27 = vector.extract_strided_slice %23 {offsets = [0, 64], sizes = [1, 32], strides = [1, 1]} : vector<1x128xf32> to vector<1x32xf32>
    %28 = arith.mulf %25, %10 : vector<1x32xf32>
    %29 = arith.mulf %24, %27 : vector<1x32xf32>
    %30 = arith.addf %28, %29 : vector<1x32xf32>
    %31 = math.tanh %30 : vector<1x32xf32>
    %32 = arith.mulf %26, %31 : vector<1x32xf32>
    %33 = vector.extract_strided_slice %14 {offsets = [1, 0], sizes = [1, 128], strides = [1, 1]} : vector<8x128xf32> to vector<1x128xf32>
    %cst_15 = arith.constant dense<0.000000e+00> : vector<1x128xf32>
    %34 = tpu.matmul %32, %1, %cst_15 {dimension_numbers = #tpu.dot_dimension_numbers<[1], [0], [0], [1], [0, 0, 1, 1], [], []>} : vector<1x32xf32>, vector<32x128xf32>, vector<1x128xf32> -> vector<1x128xf32>
    %35 = arith.addf %33, %34 : vector<1x128xf32>
    %36 = arith.negf %35 : vector<1x128xf32>
    %37 = math.exp %36 : vector<1x128xf32>
    %cst_16 = arith.constant 1.000000e+00 : f32
    %38 = vector.broadcast %cst_16 : f32 to vector<1x128xf32>
    %39 = arith.addf %38, %37 : vector<1x128xf32>
    %40 = arith.divf %38, %39 : vector<1x128xf32>
    %41 = math.tanh %35 : vector<1x128xf32>
    %42 = vector.extract_strided_slice %40 {offsets = [0, 0], sizes = [1, 32], strides = [1, 1]} : vector<1x128xf32> to vector<1x32xf32>
    %43 = vector.extract_strided_slice %40 {offsets = [0, 32], sizes = [1, 32], strides = [1, 1]} : vector<1x128xf32> to vector<1x32xf32>
    %44 = vector.extract_strided_slice %40 {offsets = [0, 96], sizes = [1, 32], strides = [1, 1]} : vector<1x128xf32> to vector<1x32xf32>
    %45 = vector.extract_strided_slice %41 {offsets = [0, 64], sizes = [1, 32], strides = [1, 1]} : vector<1x128xf32> to vector<1x32xf32>
    %46 = arith.mulf %43, %30 : vector<1x32xf32>
    %47 = arith.mulf %42, %45 : vector<1x32xf32>
    %48 = arith.addf %46, %47 : vector<1x32xf32>
    %49 = math.tanh %48 : vector<1x32xf32>
    %50 = arith.mulf %44, %49 : vector<1x32xf32>
    %51 = vector.extract_strided_slice %14 {offsets = [2, 0], sizes = [1, 128], strides = [1, 1]} : vector<8x128xf32> to vector<1x128xf32>
    %cst_17 = arith.constant dense<0.000000e+00> : vector<1x128xf32>
    %52 = tpu.matmul %50, %1, %cst_17 {dimension_numbers = #tpu.dot_dimension_numbers<[1], [0], [0], [1], [0, 0, 1, 1], [], []>} : vector<1x32xf32>, vector<32x128xf32>, vector<1x128xf32> -> vector<1x128xf32>
    %53 = arith.addf %51, %52 : vector<1x128xf32>
    %54 = arith.negf %53 : vector<1x128xf32>
    %55 = math.exp %54 : vector<1x128xf32>
    %cst_18 = arith.constant 1.000000e+00 : f32
    %56 = vector.broadcast %cst_18 : f32 to vector<1x128xf32>
    %57 = arith.addf %56, %55 : vector<1x128xf32>
    %58 = arith.divf %56, %57 : vector<1x128xf32>
    %59 = math.tanh %53 : vector<1x128xf32>
    %60 = vector.extract_strided_slice %58 {offsets = [0, 0], sizes = [1, 32], strides = [1, 1]} : vector<1x128xf32> to vector<1x32xf32>
    %61 = vector.extract_strided_slice %58 {offsets = [0, 32], sizes = [1, 32], strides = [1, 1]} : vector<1x128xf32> to vector<1x32xf32>
    %62 = vector.extract_strided_slice %58 {offsets = [0, 96], sizes = [1, 32], strides = [1, 1]} : vector<1x128xf32> to vector<1x32xf32>
    %63 = vector.extract_strided_slice %59 {offsets = [0, 64], sizes = [1, 32], strides = [1, 1]} : vector<1x128xf32> to vector<1x32xf32>
    %64 = arith.mulf %61, %48 : vector<1x32xf32>
    %65 = arith.mulf %60, %63 : vector<1x32xf32>
    %66 = arith.addf %64, %65 : vector<1x32xf32>
    %67 = math.tanh %66 : vector<1x32xf32>
    %68 = arith.mulf %62, %67 : vector<1x32xf32>
    %69 = vector.extract_strided_slice %14 {offsets = [3, 0], sizes = [1, 128], strides = [1, 1]} : vector<8x128xf32> to vector<1x128xf32>
    %cst_19 = arith.constant dense<0.000000e+00> : vector<1x128xf32>
    %70 = tpu.matmul %68, %1, %cst_19 {dimension_numbers = #tpu.dot_dimension_numbers<[1], [0], [0], [1], [0, 0, 1, 1], [], []>} : vector<1x32xf32>, vector<32x128xf32>, vector<1x128xf32> -> vector<1x128xf32>
    %71 = arith.addf %69, %70 : vector<1x128xf32>
    %72 = arith.negf %71 : vector<1x128xf32>
    %73 = math.exp %72 : vector<1x128xf32>
    %cst_20 = arith.constant 1.000000e+00 : f32
    %74 = vector.broadcast %cst_20 : f32 to vector<1x128xf32>
    %75 = arith.addf %74, %73 : vector<1x128xf32>
    %76 = arith.divf %74, %75 : vector<1x128xf32>
    %77 = math.tanh %71 : vector<1x128xf32>
    %78 = vector.extract_strided_slice %76 {offsets = [0, 0], sizes = [1, 32], strides = [1, 1]} : vector<1x128xf32> to vector<1x32xf32>
    %79 = vector.extract_strided_slice %76 {offsets = [0, 32], sizes = [1, 32], strides = [1, 1]} : vector<1x128xf32> to vector<1x32xf32>
    %80 = vector.extract_strided_slice %76 {offsets = [0, 96], sizes = [1, 32], strides = [1, 1]} : vector<1x128xf32> to vector<1x32xf32>
    %81 = vector.extract_strided_slice %77 {offsets = [0, 64], sizes = [1, 32], strides = [1, 1]} : vector<1x128xf32> to vector<1x32xf32>
    %82 = arith.mulf %79, %66 : vector<1x32xf32>
    %83 = arith.mulf %78, %81 : vector<1x32xf32>
    %84 = arith.addf %82, %83 : vector<1x32xf32>
    %85 = math.tanh %84 : vector<1x32xf32>
    %86 = arith.mulf %80, %85 : vector<1x32xf32>
    %87 = vector.extract_strided_slice %14 {offsets = [4, 0], sizes = [1, 128], strides = [1, 1]} : vector<8x128xf32> to vector<1x128xf32>
    %cst_21 = arith.constant dense<0.000000e+00> : vector<1x128xf32>
    %88 = tpu.matmul %86, %1, %cst_21 {dimension_numbers = #tpu.dot_dimension_numbers<[1], [0], [0], [1], [0, 0, 1, 1], [], []>} : vector<1x32xf32>, vector<32x128xf32>, vector<1x128xf32> -> vector<1x128xf32>
    %89 = arith.addf %87, %88 : vector<1x128xf32>
    %90 = arith.negf %89 : vector<1x128xf32>
    %91 = math.exp %90 : vector<1x128xf32>
    %cst_22 = arith.constant 1.000000e+00 : f32
    %92 = vector.broadcast %cst_22 : f32 to vector<1x128xf32>
    %93 = arith.addf %92, %91 : vector<1x128xf32>
    %94 = arith.divf %92, %93 : vector<1x128xf32>
    %95 = math.tanh %89 : vector<1x128xf32>
    %96 = vector.extract_strided_slice %94 {offsets = [0, 0], sizes = [1, 32], strides = [1, 1]} : vector<1x128xf32> to vector<1x32xf32>
    %97 = vector.extract_strided_slice %94 {offsets = [0, 32], sizes = [1, 32], strides = [1, 1]} : vector<1x128xf32> to vector<1x32xf32>
    %98 = vector.extract_strided_slice %94 {offsets = [0, 96], sizes = [1, 32], strides = [1, 1]} : vector<1x128xf32> to vector<1x32xf32>
    %99 = vector.extract_strided_slice %95 {offsets = [0, 64], sizes = [1, 32], strides = [1, 1]} : vector<1x128xf32> to vector<1x32xf32>
    %100 = arith.mulf %97, %84 : vector<1x32xf32>
    %101 = arith.mulf %96, %99 : vector<1x32xf32>
    %102 = arith.addf %100, %101 : vector<1x32xf32>
    %103 = math.tanh %102 : vector<1x32xf32>
    %104 = arith.mulf %98, %103 : vector<1x32xf32>
    %105 = vector.extract_strided_slice %14 {offsets = [5, 0], sizes = [1, 128], strides = [1, 1]} : vector<8x128xf32> to vector<1x128xf32>
    %cst_23 = arith.constant dense<0.000000e+00> : vector<1x128xf32>
    %106 = tpu.matmul %104, %1, %cst_23 {dimension_numbers = #tpu.dot_dimension_numbers<[1], [0], [0], [1], [0, 0, 1, 1], [], []>} : vector<1x32xf32>, vector<32x128xf32>, vector<1x128xf32> -> vector<1x128xf32>
    %107 = arith.addf %105, %106 : vector<1x128xf32>
    %108 = arith.negf %107 : vector<1x128xf32>
    %109 = math.exp %108 : vector<1x128xf32>
    %cst_24 = arith.constant 1.000000e+00 : f32
    %110 = vector.broadcast %cst_24 : f32 to vector<1x128xf32>
    %111 = arith.addf %110, %109 : vector<1x128xf32>
    %112 = arith.divf %110, %111 : vector<1x128xf32>
    %113 = math.tanh %107 : vector<1x128xf32>
    %114 = vector.extract_strided_slice %112 {offsets = [0, 0], sizes = [1, 32], strides = [1, 1]} : vector<1x128xf32> to vector<1x32xf32>
    %115 = vector.extract_strided_slice %112 {offsets = [0, 32], sizes = [1, 32], strides = [1, 1]} : vector<1x128xf32> to vector<1x32xf32>
    %116 = vector.extract_strided_slice %112 {offsets = [0, 96], sizes = [1, 32], strides = [1, 1]} : vector<1x128xf32> to vector<1x32xf32>
    %117 = vector.extract_strided_slice %113 {offsets = [0, 64], sizes = [1, 32], strides = [1, 1]} : vector<1x128xf32> to vector<1x32xf32>
    %118 = arith.mulf %115, %102 : vector<1x32xf32>
    %119 = arith.mulf %114, %117 : vector<1x32xf32>
    %120 = arith.addf %118, %119 : vector<1x32xf32>
    %121 = math.tanh %120 : vector<1x32xf32>
    %122 = arith.mulf %116, %121 : vector<1x32xf32>
    %123 = vector.extract_strided_slice %14 {offsets = [6, 0], sizes = [1, 128], strides = [1, 1]} : vector<8x128xf32> to vector<1x128xf32>
    %cst_25 = arith.constant dense<0.000000e+00> : vector<1x128xf32>
    %124 = tpu.matmul %122, %1, %cst_25 {dimension_numbers = #tpu.dot_dimension_numbers<[1], [0], [0], [1], [0, 0, 1, 1], [], []>} : vector<1x32xf32>, vector<32x128xf32>, vector<1x128xf32> -> vector<1x128xf32>
    %125 = arith.addf %123, %124 : vector<1x128xf32>
    %126 = arith.negf %125 : vector<1x128xf32>
    %127 = math.exp %126 : vector<1x128xf32>
    %cst_26 = arith.constant 1.000000e+00 : f32
    %128 = vector.broadcast %cst_26 : f32 to vector<1x128xf32>
    %129 = arith.addf %128, %127 : vector<1x128xf32>
    %130 = arith.divf %128, %129 : vector<1x128xf32>
    %131 = math.tanh %125 : vector<1x128xf32>
    %132 = vector.extract_strided_slice %130 {offsets = [0, 0], sizes = [1, 32], strides = [1, 1]} : vector<1x128xf32> to vector<1x32xf32>
    %133 = vector.extract_strided_slice %130 {offsets = [0, 32], sizes = [1, 32], strides = [1, 1]} : vector<1x128xf32> to vector<1x32xf32>
    %134 = vector.extract_strided_slice %130 {offsets = [0, 96], sizes = [1, 32], strides = [1, 1]} : vector<1x128xf32> to vector<1x32xf32>
    %135 = vector.extract_strided_slice %131 {offsets = [0, 64], sizes = [1, 32], strides = [1, 1]} : vector<1x128xf32> to vector<1x32xf32>
    %136 = arith.mulf %133, %120 : vector<1x32xf32>
    %137 = arith.mulf %132, %135 : vector<1x32xf32>
    %138 = arith.addf %136, %137 : vector<1x32xf32>
    %139 = math.tanh %138 : vector<1x32xf32>
    %140 = arith.mulf %134, %139 : vector<1x32xf32>
    %141 = vector.extract_strided_slice %14 {offsets = [7, 0], sizes = [1, 128], strides = [1, 1]} : vector<8x128xf32> to vector<1x128xf32>
    %cst_27 = arith.constant dense<0.000000e+00> : vector<1x128xf32>
    %142 = tpu.matmul %140, %1, %cst_27 {dimension_numbers = #tpu.dot_dimension_numbers<[1], [0], [0], [1], [0, 0, 1, 1], [], []>} : vector<1x32xf32>, vector<32x128xf32>, vector<1x128xf32> -> vector<1x128xf32>
    %143 = arith.addf %141, %142 : vector<1x128xf32>
    %144 = arith.negf %143 : vector<1x128xf32>
    %145 = math.exp %144 : vector<1x128xf32>
    %cst_28 = arith.constant 1.000000e+00 : f32
    %146 = vector.broadcast %cst_28 : f32 to vector<1x128xf32>
    %147 = arith.addf %146, %145 : vector<1x128xf32>
    %148 = arith.divf %146, %147 : vector<1x128xf32>
    %149 = math.tanh %143 : vector<1x128xf32>
    %150 = vector.extract_strided_slice %148 {offsets = [0, 0], sizes = [1, 32], strides = [1, 1]} : vector<1x128xf32> to vector<1x32xf32>
    %151 = vector.extract_strided_slice %148 {offsets = [0, 32], sizes = [1, 32], strides = [1, 1]} : vector<1x128xf32> to vector<1x32xf32>
    %152 = vector.extract_strided_slice %148 {offsets = [0, 96], sizes = [1, 32], strides = [1, 1]} : vector<1x128xf32> to vector<1x32xf32>
    %153 = vector.extract_strided_slice %149 {offsets = [0, 64], sizes = [1, 32], strides = [1, 1]} : vector<1x128xf32> to vector<1x32xf32>
    %154 = arith.mulf %151, %138 : vector<1x32xf32>
    %155 = arith.mulf %150, %153 : vector<1x32xf32>
    %156 = arith.addf %154, %155 : vector<1x32xf32>
    %157 = math.tanh %156 : vector<1x32xf32>
    %158 = arith.mulf %152, %157 : vector<1x32xf32>
    %159 = tpu.concatenate %32, %50, %68, %86, %104, %122, %140, %158 in 0 : vector<1x32xf32>, vector<1x32xf32>, vector<1x32xf32>, vector<1x32xf32>, vector<1x32xf32>, vector<1x32xf32>, vector<1x32xf32>, vector<1x32xf32> -> vector<8x32xf32>
    %160 = arith.index_cast %12 : i32 to index
    %c0_29 = arith.constant 0 : index
    %161 = vector.load %arg10[%160, %c0_29] : memref<8x32xf32, #tpu.memory_space<vmem>>, vector<8x32xf32>
    tpu.vector_store %arg10[%160, %c0_29], %159 {strides = array<i32>} : memref<8x32xf32, #tpu.memory_space<vmem>>, vector<8x32xf32>,
    %c1_i32 = arith.constant 1 : i32
    %c0_30 = arith.constant 0 : index
    %c0_31 = arith.constant 0 : index
    %162 = vector.load %arg8[%c0_30, %c0_31] : memref<2x32xf32, #tpu.memory_space<vmem>>, vector<1x32xf32>
    tpu.vector_store %arg8[%c0_30, %c0_31], %158 {strides = array<i32>} : memref<2x32xf32, #tpu.memory_space<vmem>>, vector<1x32xf32>,
    %c0_32 = arith.constant 0 : index
    %c0_33 = arith.constant 0 : index
    %163 = vector.load %arg9[%c0_32, %c0_33] : memref<2x32xf32, #tpu.memory_space<vmem>>, vector<1x32xf32>
    tpu.vector_store %arg9[%c0_32, %c0_33], %156 {strides = array<i32>} : memref<2x32xf32, #tpu.memory_space<vmem>>, vector<1x32xf32>,
    %c1 = arith.constant 1 : index
    %c0_34 = arith.constant 0 : index
    %c0_35 = arith.constant 0 : index
    %164 = vector.load %arg3[%c1, %c0_34, %c0_35] : memref<2x32x128xf32, #tpu.memory_space<vmem>>, vector<1x32x128xf32>
    %165 = vector.shape_cast %164 : vector<1x32x128xf32> to vector<32x128xf32>
    %c1_36 = arith.constant 1 : index
    %c0_37 = arith.constant 0 : index
    %166 = vector.load %arg4[%c1_36, %c0_37] : memref<2x128xf32, #tpu.memory_space<vmem>>, vector<1x128xf32>
    %c0_38 = arith.constant 0 : index
    %c0_39 = arith.constant 0 : index
    %167 = vector.load %arg10[%c0_38, %c0_39] : memref<8x32xf32, #tpu.memory_space<vmem>>, vector<8x32xf32>
    %c0_40 = arith.constant 0 : index
    %c0_41 = arith.constant 0 : index
    %168 = vector.load %arg2[%c0_40, %c0_41] : memref<32x128xf32, #tpu.memory_space<vmem>>, vector<32x128xf32>
    %cst_42 = arith.constant dense<0.000000e+00> : vector<8x128xf32>
    %169 = tpu.matmul %167, %168, %cst_42 {dimension_numbers = #tpu.dot_dimension_numbers<[1], [0], [0], [1], [0, 0, 1, 1], [], []>} : vector<8x32xf32>, vector<32x128xf32>, vector<8x128xf32> -> vector<8x128xf32>
    %170 = vector.broadcast %166 : vector<1x128xf32> to vector<8x128xf32>
    %171 = arith.addf %169, %170 : vector<8x128xf32>
    %c0_43 = arith.constant 0 : index
    %c0_44 = arith.constant 0 : index
    %172 = vector.load %arg11[%c0_43, %c0_44] : memref<8x128xf32, #tpu.memory_space<vmem>>, vector<8x128xf32>
    tpu.vector_store %arg11[%c0_43, %c0_44], %171 {strides = array<i32>} : memref<8x128xf32, #tpu.memory_space<vmem>>, vector<8x128xf32>,
    %cst_45 = arith.constant 0.000000e+00 : f32
    %173 = vector.broadcast %cst_45 : f32 to vector<1x32xf32>
    %cst_46 = arith.constant 0.000000e+00 : f32
    %174 = vector.broadcast %cst_46 : f32 to vector<1x32xf32>
    %c0_i32_47 = arith.constant 0 : i32
    %c8_i32_48 = arith.constant 8 : i32
    %175 = arith.muli %c0_i32_47, %c8_i32_48 : i32
    %176 = tpu.assume_multiple %175, 8 : i32
    %177 = arith.index_cast %176 : i32 to index
    %c0_49 = arith.constant 0 : index
    %178 = vector.load %arg11[%177, %c0_49] : memref<8x128xf32, #tpu.memory_space<vmem>>, vector<8x128xf32>
    %179 = vector.extract_strided_slice %178 {offsets = [0, 0], sizes = [1, 128], strides = [1, 1]} : vector<8x128xf32> to vector<1x128xf32>
    %cst_50 = arith.constant dense<0.000000e+00> : vector<1x128xf32>
    %180 = tpu.matmul %173, %165, %cst_50 {dimension_numbers = #tpu.dot_dimension_numbers<[1], [0], [0], [1], [0, 0, 1, 1], [], []>} : vector<1x32xf32>, vector<32x128xf32>, vector<1x128xf32> -> vector<1x128xf32>
    %181 = arith.addf %179, %180 : vector<1x128xf32>
    %182 = arith.negf %181 : vector<1x128xf32>
    %183 = math.exp %182 : vector<1x128xf32>
    %cst_51 = arith.constant 1.000000e+00 : f32
    %184 = vector.broadcast %cst_51 : f32 to vector<1x128xf32>
    %185 = arith.addf %184, %183 : vector<1x128xf32>
    %186 = arith.divf %184, %185 : vector<1x128xf32>
    %187 = math.tanh %181 : vector<1x128xf32>
    %188 = vector.extract_strided_slice %186 {offsets = [0, 0], sizes = [1, 32], strides = [1, 1]} : vector<1x128xf32> to vector<1x32xf32>
    %189 = vector.extract_strided_slice %186 {offsets = [0, 32], sizes = [1, 32], strides = [1, 1]} : vector<1x128xf32> to vector<1x32xf32>
    %190 = vector.extract_strided_slice %186 {offsets = [0, 96], sizes = [1, 32], strides = [1, 1]} : vector<1x128xf32> to vector<1x32xf32>
    %191 = vector.extract_strided_slice %187 {offsets = [0, 64], sizes = [1, 32], strides = [1, 1]} : vector<1x128xf32> to vector<1x32xf32>
    %192 = arith.mulf %189, %174 : vector<1x32xf32>
    %193 = arith.mulf %188, %191 : vector<1x32xf32>
    %194 = arith.addf %192, %193 : vector<1x32xf32>
    %195 = math.tanh %194 : vector<1x32xf32>
    %196 = arith.mulf %190, %195 : vector<1x32xf32>
    %197 = vector.extract_strided_slice %178 {offsets = [1, 0], sizes = [1, 128], strides = [1, 1]} : vector<8x128xf32> to vector<1x128xf32>
    %cst_52 = arith.constant dense<0.000000e+00> : vector<1x128xf32>
    %198 = tpu.matmul %196, %165, %cst_52 {dimension_numbers = #tpu.dot_dimension_numbers<[1], [0], [0], [1], [0, 0, 1, 1], [], []>} : vector<1x32xf32>, vector<32x128xf32>, vector<1x128xf32> -> vector<1x128xf32>
    %199 = arith.addf %197, %198 : vector<1x128xf32>
    %200 = arith.negf %199 : vector<1x128xf32>
    %201 = math.exp %200 : vector<1x128xf32>
    %cst_53 = arith.constant 1.000000e+00 : f32
    %202 = vector.broadcast %cst_53 : f32 to vector<1x128xf32>
    %203 = arith.addf %202, %201 : vector<1x128xf32>
    %204 = arith.divf %202, %203 : vector<1x128xf32>
    %205 = math.tanh %199 : vector<1x128xf32>
    %206 = vector.extract_strided_slice %204 {offsets = [0, 0], sizes = [1, 32], strides = [1, 1]} : vector<1x128xf32> to vector<1x32xf32>
    %207 = vector.extract_strided_slice %204 {offsets = [0, 32], sizes = [1, 32], strides = [1, 1]} : vector<1x128xf32> to vector<1x32xf32>
    %208 = vector.extract_strided_slice %204 {offsets = [0, 96], sizes = [1, 32], strides = [1, 1]} : vector<1x128xf32> to vector<1x32xf32>
    %209 = vector.extract_strided_slice %205 {offsets = [0, 64], sizes = [1, 32], strides = [1, 1]} : vector<1x128xf32> to vector<1x32xf32>
    %210 = arith.mulf %207, %194 : vector<1x32xf32>
    %211 = arith.mulf %206, %209 : vector<1x32xf32>
    %212 = arith.addf %210, %211 : vector<1x32xf32>
    %213 = math.tanh %212 : vector<1x32xf32>
    %214 = arith.mulf %208, %213 : vector<1x32xf32>
    %215 = vector.extract_strided_slice %178 {offsets = [2, 0], sizes = [1, 128], strides = [1, 1]} : vector<8x128xf32> to vector<1x128xf32>
    %cst_54 = arith.constant dense<0.000000e+00> : vector<1x128xf32>
    %216 = tpu.matmul %214, %165, %cst_54 {dimension_numbers = #tpu.dot_dimension_numbers<[1], [0], [0], [1], [0, 0, 1, 1], [], []>} : vector<1x32xf32>, vector<32x128xf32>, vector<1x128xf32> -> vector<1x128xf32>
    %217 = arith.addf %215, %216 : vector<1x128xf32>
    %218 = arith.negf %217 : vector<1x128xf32>
    %219 = math.exp %218 : vector<1x128xf32>
    %cst_55 = arith.constant 1.000000e+00 : f32
    %220 = vector.broadcast %cst_55 : f32 to vector<1x128xf32>
    %221 = arith.addf %220, %219 : vector<1x128xf32>
    %222 = arith.divf %220, %221 : vector<1x128xf32>
    %223 = math.tanh %217 : vector<1x128xf32>
    %224 = vector.extract_strided_slice %222 {offsets = [0, 0], sizes = [1, 32], strides = [1, 1]} : vector<1x128xf32> to vector<1x32xf32>
    %225 = vector.extract_strided_slice %222 {offsets = [0, 32], sizes = [1, 32], strides = [1, 1]} : vector<1x128xf32> to vector<1x32xf32>
    %226 = vector.extract_strided_slice %222 {offsets = [0, 96], sizes = [1, 32], strides = [1, 1]} : vector<1x128xf32> to vector<1x32xf32>
    %227 = vector.extract_strided_slice %223 {offsets = [0, 64], sizes = [1, 32], strides = [1, 1]} : vector<1x128xf32> to vector<1x32xf32>
    %228 = arith.mulf %225, %212 : vector<1x32xf32>
    %229 = arith.mulf %224, %227 : vector<1x32xf32>
    %230 = arith.addf %228, %229 : vector<1x32xf32>
    %231 = math.tanh %230 : vector<1x32xf32>
    %232 = arith.mulf %226, %231 : vector<1x32xf32>
    %233 = vector.extract_strided_slice %178 {offsets = [3, 0], sizes = [1, 128], strides = [1, 1]} : vector<8x128xf32> to vector<1x128xf32>
    %cst_56 = arith.constant dense<0.000000e+00> : vector<1x128xf32>
    %234 = tpu.matmul %232, %165, %cst_56 {dimension_numbers = #tpu.dot_dimension_numbers<[1], [0], [0], [1], [0, 0, 1, 1], [], []>} : vector<1x32xf32>, vector<32x128xf32>, vector<1x128xf32> -> vector<1x128xf32>
    %235 = arith.addf %233, %234 : vector<1x128xf32>
    %236 = arith.negf %235 : vector<1x128xf32>
    %237 = math.exp %236 : vector<1x128xf32>
    %cst_57 = arith.constant 1.000000e+00 : f32
    %238 = vector.broadcast %cst_57 : f32 to vector<1x128xf32>
    %239 = arith.addf %238, %237 : vector<1x128xf32>
    %240 = arith.divf %238, %239 : vector<1x128xf32>
    %241 = math.tanh %235 : vector<1x128xf32>
    %242 = vector.extract_strided_slice %240 {offsets = [0, 0], sizes = [1, 32], strides = [1, 1]} : vector<1x128xf32> to vector<1x32xf32>
    %243 = vector.extract_strided_slice %240 {offsets = [0, 32], sizes = [1, 32], strides = [1, 1]} : vector<1x128xf32> to vector<1x32xf32>
    %244 = vector.extract_strided_slice %240 {offsets = [0, 96], sizes = [1, 32], strides = [1, 1]} : vector<1x128xf32> to vector<1x32xf32>
    %245 = vector.extract_strided_slice %241 {offsets = [0, 64], sizes = [1, 32], strides = [1, 1]} : vector<1x128xf32> to vector<1x32xf32>
    %246 = arith.mulf %243, %230 : vector<1x32xf32>
    %247 = arith.mulf %242, %245 : vector<1x32xf32>
    %248 = arith.addf %246, %247 : vector<1x32xf32>
    %249 = math.tanh %248 : vector<1x32xf32>
    %250 = arith.mulf %244, %249 : vector<1x32xf32>
    %251 = vector.extract_strided_slice %178 {offsets = [4, 0], sizes = [1, 128], strides = [1, 1]} : vector<8x128xf32> to vector<1x128xf32>
    %cst_58 = arith.constant dense<0.000000e+00> : vector<1x128xf32>
    %252 = tpu.matmul %250, %165, %cst_58 {dimension_numbers = #tpu.dot_dimension_numbers<[1], [0], [0], [1], [0, 0, 1, 1], [], []>} : vector<1x32xf32>, vector<32x128xf32>, vector<1x128xf32> -> vector<1x128xf32>
    %253 = arith.addf %251, %252 : vector<1x128xf32>
    %254 = arith.negf %253 : vector<1x128xf32>
    %255 = math.exp %254 : vector<1x128xf32>
    %cst_59 = arith.constant 1.000000e+00 : f32
    %256 = vector.broadcast %cst_59 : f32 to vector<1x128xf32>
    %257 = arith.addf %256, %255 : vector<1x128xf32>
    %258 = arith.divf %256, %257 : vector<1x128xf32>
    %259 = math.tanh %253 : vector<1x128xf32>
    %260 = vector.extract_strided_slice %258 {offsets = [0, 0], sizes = [1, 32], strides = [1, 1]} : vector<1x128xf32> to vector<1x32xf32>
    %261 = vector.extract_strided_slice %258 {offsets = [0, 32], sizes = [1, 32], strides = [1, 1]} : vector<1x128xf32> to vector<1x32xf32>
    %262 = vector.extract_strided_slice %258 {offsets = [0, 96], sizes = [1, 32], strides = [1, 1]} : vector<1x128xf32> to vector<1x32xf32>
    %263 = vector.extract_strided_slice %259 {offsets = [0, 64], sizes = [1, 32], strides = [1, 1]} : vector<1x128xf32> to vector<1x32xf32>
    %264 = arith.mulf %261, %248 : vector<1x32xf32>
    %265 = arith.mulf %260, %263 : vector<1x32xf32>
    %266 = arith.addf %264, %265 : vector<1x32xf32>
    %267 = math.tanh %266 : vector<1x32xf32>
    %268 = arith.mulf %262, %267 : vector<1x32xf32>
    %269 = vector.extract_strided_slice %178 {offsets = [5, 0], sizes = [1, 128], strides = [1, 1]} : vector<8x128xf32> to vector<1x128xf32>
    %cst_60 = arith.constant dense<0.000000e+00> : vector<1x128xf32>
    %270 = tpu.matmul %268, %165, %cst_60 {dimension_numbers = #tpu.dot_dimension_numbers<[1], [0], [0], [1], [0, 0, 1, 1], [], []>} : vector<1x32xf32>, vector<32x128xf32>, vector<1x128xf32> -> vector<1x128xf32>
    %271 = arith.addf %269, %270 : vector<1x128xf32>
    %272 = arith.negf %271 : vector<1x128xf32>
    %273 = math.exp %272 : vector<1x128xf32>
    %cst_61 = arith.constant 1.000000e+00 : f32
    %274 = vector.broadcast %cst_61 : f32 to vector<1x128xf32>
    %275 = arith.addf %274, %273 : vector<1x128xf32>
    %276 = arith.divf %274, %275 : vector<1x128xf32>
    %277 = math.tanh %271 : vector<1x128xf32>
    %278 = vector.extract_strided_slice %276 {offsets = [0, 0], sizes = [1, 32], strides = [1, 1]} : vector<1x128xf32> to vector<1x32xf32>
    %279 = vector.extract_strided_slice %276 {offsets = [0, 32], sizes = [1, 32], strides = [1, 1]} : vector<1x128xf32> to vector<1x32xf32>
    %280 = vector.extract_strided_slice %276 {offsets = [0, 96], sizes = [1, 32], strides = [1, 1]} : vector<1x128xf32> to vector<1x32xf32>
    %281 = vector.extract_strided_slice %277 {offsets = [0, 64], sizes = [1, 32], strides = [1, 1]} : vector<1x128xf32> to vector<1x32xf32>
    %282 = arith.mulf %279, %266 : vector<1x32xf32>
    %283 = arith.mulf %278, %281 : vector<1x32xf32>
    %284 = arith.addf %282, %283 : vector<1x32xf32>
    %285 = math.tanh %284 : vector<1x32xf32>
    %286 = arith.mulf %280, %285 : vector<1x32xf32>
    %287 = vector.extract_strided_slice %178 {offsets = [6, 0], sizes = [1, 128], strides = [1, 1]} : vector<8x128xf32> to vector<1x128xf32>
    %cst_62 = arith.constant dense<0.000000e+00> : vector<1x128xf32>
    %288 = tpu.matmul %286, %165, %cst_62 {dimension_numbers = #tpu.dot_dimension_numbers<[1], [0], [0], [1], [0, 0, 1, 1], [], []>} : vector<1x32xf32>, vector<32x128xf32>, vector<1x128xf32> -> vector<1x128xf32>
    %289 = arith.addf %287, %288 : vector<1x128xf32>
    %290 = arith.negf %289 : vector<1x128xf32>
    %291 = math.exp %290 : vector<1x128xf32>
    %cst_63 = arith.constant 1.000000e+00 : f32
    %292 = vector.broadcast %cst_63 : f32 to vector<1x128xf32>
    %293 = arith.addf %292, %291 : vector<1x128xf32>
    %294 = arith.divf %292, %293 : vector<1x128xf32>
    %295 = math.tanh %289 : vector<1x128xf32>
    %296 = vector.extract_strided_slice %294 {offsets = [0, 0], sizes = [1, 32], strides = [1, 1]} : vector<1x128xf32> to vector<1x32xf32>
    %297 = vector.extract_strided_slice %294 {offsets = [0, 32], sizes = [1, 32], strides = [1, 1]} : vector<1x128xf32> to vector<1x32xf32>
    %298 = vector.extract_strided_slice %294 {offsets = [0, 96], sizes = [1, 32], strides = [1, 1]} : vector<1x128xf32> to vector<1x32xf32>
    %299 = vector.extract_strided_slice %295 {offsets = [0, 64], sizes = [1, 32], strides = [1, 1]} : vector<1x128xf32> to vector<1x32xf32>
    %300 = arith.mulf %297, %284 : vector<1x32xf32>
    %301 = arith.mulf %296, %299 : vector<1x32xf32>
    %302 = arith.addf %300, %301 : vector<1x32xf32>
    %303 = math.tanh %302 : vector<1x32xf32>
    %304 = arith.mulf %298, %303 : vector<1x32xf32>
    %305 = vector.extract_strided_slice %178 {offsets = [7, 0], sizes = [1, 128], strides = [1, 1]} : vector<8x128xf32> to vector<1x128xf32>
    %cst_64 = arith.constant dense<0.000000e+00> : vector<1x128xf32>
    %306 = tpu.matmul %304, %165, %cst_64 {dimension_numbers = #tpu.dot_dimension_numbers<[1], [0], [0], [1], [0, 0, 1, 1], [], []>} : vector<1x32xf32>, vector<32x128xf32>, vector<1x128xf32> -> vector<1x128xf32>
    %307 = arith.addf %305, %306 : vector<1x128xf32>
    %308 = arith.negf %307 : vector<1x128xf32>
    %309 = math.exp %308 : vector<1x128xf32>
    %cst_65 = arith.constant 1.000000e+00 : f32
    %310 = vector.broadcast %cst_65 : f32 to vector<1x128xf32>
    %311 = arith.addf %310, %309 : vector<1x128xf32>
    %312 = arith.divf %310, %311 : vector<1x128xf32>
    %313 = math.tanh %307 : vector<1x128xf32>
    %314 = vector.extract_strided_slice %312 {offsets = [0, 0], sizes = [1, 32], strides = [1, 1]} : vector<1x128xf32> to vector<1x32xf32>
    %315 = vector.extract_strided_slice %312 {offsets = [0, 32], sizes = [1, 32], strides = [1, 1]} : vector<1x128xf32> to vector<1x32xf32>
    %316 = vector.extract_strided_slice %312 {offsets = [0, 96], sizes = [1, 32], strides = [1, 1]} : vector<1x128xf32> to vector<1x32xf32>
    %317 = vector.extract_strided_slice %313 {offsets = [0, 64], sizes = [1, 32], strides = [1, 1]} : vector<1x128xf32> to vector<1x32xf32>
    %318 = arith.mulf %315, %302 : vector<1x32xf32>
    %319 = arith.mulf %314, %317 : vector<1x32xf32>
    %320 = arith.addf %318, %319 : vector<1x32xf32>
    %321 = math.tanh %320 : vector<1x32xf32>
    %322 = arith.mulf %316, %321 : vector<1x32xf32>
    %323 = tpu.concatenate %196, %214, %232, %250, %268, %286, %304, %322 in 0 : vector<1x32xf32>, vector<1x32xf32>, vector<1x32xf32>, vector<1x32xf32>, vector<1x32xf32>, vector<1x32xf32>, vector<1x32xf32>, vector<1x32xf32> -> vector<8x32xf32>
    %324 = arith.index_cast %176 : i32 to index
    %c0_66 = arith.constant 0 : index
    %325 = vector.load %arg10[%324, %c0_66] : memref<8x32xf32, #tpu.memory_space<vmem>>, vector<8x32xf32>
    tpu.vector_store %arg10[%324, %c0_66], %323 {strides = array<i32>} : memref<8x32xf32, #tpu.memory_space<vmem>>, vector<8x32xf32>,
    %c1_i32_67 = arith.constant 1 : i32
    %c1_68 = arith.constant 1 : index
    %c0_69 = arith.constant 0 : index
    %326 = vector.load %arg8[%c1_68, %c0_69] : memref<2x32xf32, #tpu.memory_space<vmem>>, vector<1x32xf32>
    tpu.vector_store %arg8[%c1_68, %c0_69], %322 {strides = array<i32>} : memref<2x32xf32, #tpu.memory_space<vmem>>, vector<1x32xf32>,
    %c1_70 = arith.constant 1 : index
    %c0_71 = arith.constant 0 : index
    %327 = vector.load %arg9[%c1_70, %c0_71] : memref<2x32xf32, #tpu.memory_space<vmem>>, vector<1x32xf32>
    tpu.vector_store %arg9[%c1_70, %c0_71], %320 {strides = array<i32>} : memref<2x32xf32, #tpu.memory_space<vmem>>, vector<1x32xf32>,
    %c0_72 = arith.constant 0 : index
    %c0_73 = arith.constant 0 : index
    %328 = vector.load %arg10[%c0_72, %c0_73] : memref<8x32xf32, #tpu.memory_space<vmem>>, vector<8x32xf32>
    %c0_74 = arith.constant 0 : index
    %c0_75 = arith.constant 0 : index
    %329 = vector.load %arg5[%c0_74, %c0_75] : memref<32x128xf32, #tpu.memory_space<vmem>>, vector<32x128xf32>
    %cst_76 = arith.constant dense<0.000000e+00> : vector<8x128xf32>
    %330 = tpu.matmul %328, %329, %cst_76 {dimension_numbers = #tpu.dot_dimension_numbers<[1], [0], [0], [1], [0, 0, 1, 1], [], []>} : vector<8x32xf32>, vector<32x128xf32>, vector<8x128xf32> -> vector<8x128xf32>
    %c0_77 = arith.constant 0 : index
    %c0_78 = arith.constant 0 : index
    %331 = vector.load %arg6[%c0_77, %c0_78] : memref<1x128xf32, #tpu.memory_space<vmem>>, vector<1x128xf32>
    %332 = vector.broadcast %331 : vector<1x128xf32> to vector<8x128xf32>
    %333 = arith.addf %330, %332 : vector<8x128xf32>
    %c0_79 = arith.constant 0 : index
    %c0_80 = arith.constant 0 : index
    %334 = vector.load %arg7[%c0_79, %c0_80] : memref<8x128xf32, #tpu.memory_space<vmem>>, vector<8x128xf32>
    tpu.vector_store %arg7[%c0_79, %c0_80], %333 {strides = array<i32>} : memref<8x128xf32, #tpu.memory_space<vmem>>, vector<8x128xf32>,
    return
  }
}

</mosaic_0001>

<llo_original>
// kernel: tpu_custom_call.1
$region0: #{tpu_custom_call.1}
  #allocation0 [shape = 'u32[]', space=smem, size = 0x4, offset = 0x4, fixed_abs, tag = 'smem constant byte address 0x4 - core index']
  #allocation1 [shape = 'u32[144,128]{1,0:T(1,128)}', space=vmem, size = 0x12000, scoped, tag = 'internal scratch']
  #allocation2 [shape = 'f32[8,32]{1,0:T(8,128)}', space=vmem, size = 0x1000, scoped, tag = 'scratch operand']
  #allocation3 [shape = 'f32[8,128]{1,0:T(8,128)}', space=vmem, size = 0x1000, scoped, tag = 'scratch operand']
  %s0 = inlined_call_operand.vmem [shape: f32[8,4], index: 0, kind: input, shape index: {}]
  %s1 = inlined_call_operand.vmem [shape: f32[4,128], index: 1, kind: input, shape index: {}]
  %s2 = inlined_call_operand.hbm [shape: f32[32,128], index: 2, kind: input, shape index: {}]
  %s3 = inlined_call_operand.hbm [shape: f32[2,32,128], index: 3, kind: input, shape index: {}]
  %s4 = inlined_call_operand.vmem [shape: f32[2,128], index: 4, kind: input, shape index: {}]
  %s5 = inlined_call_operand.hbm [shape: f32[32,128], index: 5, kind: input, shape index: {}]
  %s6 = inlined_call_operand.vmem [shape: f32[1,128], index: 6, kind: input, shape index: {}]
  %s7 = inlined_call_operand.hbm [shape: f32[8,128], index: 7, kind: output, shape index: {0}]
  %s8 = inlined_call_operand.hbm [shape: f32[2,32], index: 8, kind: output, shape index: {1}]
  %s9 = inlined_call_operand.hbm [shape: f32[2,32], index: 9, kind: output, shape index: {2}]
  %10 = xla_tuple %s7, %s8, %s9
  %s11 = sld [smem:[#allocation0]]
  $region66: #{tpu_custom_call.1} parent=0
    _
  %s13 = ssub.s32 1, %s11
  %s14 = scalar_select 0, %s13, %s11
  $region1: #{tpu_custom_call.1} parent=0
    #allocation4 [shape = 'u8[16384]{0}', space=vmem, size = 0x4000, scoped, tag = 'input window, operand 2, single buffered']
    #allocation5 [shape = 's32[1]{0}', space=sflag, size = 0x4, scoped, tag = 'scoped memory for tpu_custom_call.1']
    #allocation6 [shape = 's32[1]{0}', space=sflag, size = 0x4, scoped, tag = 'scoped memory for tpu_custom_call.1']
    #allocation7 [shape = 'u8[32768]{0}', space=vmem, size = 0x8000, scoped, tag = 'input window, operand 3, single buffered']
    #allocation8 [shape = 's32[1]{0}', space=sflag, size = 0x4, scoped, tag = 'scoped memory for tpu_custom_call.1']
    #allocation9 [shape = 'u8[16384]{0}', space=vmem, size = 0x4000, scoped, tag = 'input window, operand 5, single buffered']
    #allocation10 [shape = 'u8[4096]{0}', space=vmem, size = 0x1000, scoped, tag = 'output window, operand 0, single buffered']
    #allocation11 [shape = 'u8[1024]{0}', space=vmem, size = 0x400, scoped, tag = 'output window, operand 1, single buffered']
    #allocation12 [shape = 's32[1]{0}', space=sflag, size = 0x4, scoped, tag = 'scoped memory for tpu_custom_call.1']
    #allocation13 [shape = 'u8[1024]{0}', space=vmem, size = 0x400, scoped, tag = 'output window, operand 2, single buffered']
    %15 = vsyncpa [#allocation5], 0
    %16 = vsyncpa [#allocation8], 0
    %17 = vsyncpa [#allocation6], 0
    %18 = vsyncpa [#allocation12], 0
    // Predicated region
    $region2: #{tpu_custom_call.1} parent=1 // pred_check
      _
    $region3: #{tpu_custom_call.1} parent=1 // pred_check_branch
      %20 = sbr.rel (0) target = $region5
    $region4: #{tpu_custom_call.1} parent=1 // pred_region
      _
    $region5: #{tpu_custom_call.1} parent=1 // pred_fallthru
      _
    // Predicated region
    $region6: #{tpu_custom_call.1} parent=1 // pred_check
      _
    $region7: #{tpu_custom_call.1} parent=1 // pred_check_branch
      %22 = sbr.rel (0) target = $region9
    $region8: #{tpu_custom_call.1} parent=1 // pred_region
      _
    $region9: #{tpu_custom_call.1} parent=1 // pred_fallthru
      _
    // Predicated region
    $region10: #{tpu_custom_call.1} parent=1 // pred_check
      _
    $region11: #{tpu_custom_call.1} parent=1 // pred_check_branch
      %24 = sbr.rel (0) target = $region13
    $region12: #{tpu_custom_call.1} parent=1 // pred_region
      %s26 = ssub.s32 512, 512
      %27 = vsyncadd [#allocation5], %s26
      %s28 = sshll.u32 [#allocation4], 4
      %s29 = int_to_ptr.vmem [resolvable:$true] %s28
      %34 = dma.hbm_to_vmem [thread:$0]  %s2, 512, %s29, [#allocation5], 128, 128, 8
    $region13: #{tpu_custom_call.1} parent=1 // pred_fallthru
      _
    // Predicated region
    $region14: #{tpu_custom_call.1} parent=1 // pred_check
      _
    $region15: #{tpu_custom_call.1} parent=1 // pred_check_branch
      %36 = sbr.rel (0) target = $region17
    $region16: #{tpu_custom_call.1} parent=1 // pred_region
      %s38 = ssub.s32 1024, 1024
      %39 = vsyncadd [#allocation8], %s38
      %s40 = sshll.u32 [#allocation7], 4
      %s41 = int_to_ptr.vmem [resolvable:$true] %s40
      %46 = dma.hbm_to_vmem [thread:$0]  %s3, 1024, %s41, [#allocation8], 128, 128, 8
    $region17: #{tpu_custom_call.1} parent=1 // pred_fallthru
      _
    // Predicated region
    $region18: #{tpu_custom_call.1} parent=1 // pred_check
      _
    $region19: #{tpu_custom_call.1} parent=1 // pred_check_branch
      %48 = sbr.rel (0) target = $region21
    $region20: #{tpu_custom_call.1} parent=1 // pred_region
      _
    $region21: #{tpu_custom_call.1} parent=1 // pred_fallthru
      _
    // Predicated region
    $region22: #{tpu_custom_call.1} parent=1 // pred_check
      _
    $region23: #{tpu_custom_call.1} parent=1 // pred_check_branch
      %50 = sbr.rel (0) target = $region25
    $region24: #{tpu_custom_call.1} parent=1 // pred_region
      %s52 = ssub.s32 512, 512
      %53 = vsyncadd [#allocation8], %s52
      %s54 = sshll.u32 [#allocation9], 4
      %s55 = int_to_ptr.vmem [resolvable:$true] %s54
      %60 = dma.hbm_to_vmem [thread:$0]  %s5, 512, %s55, [#allocation8], 128, 128, 8
    $region25: #{tpu_custom_call.1} parent=1 // pred_fallthru
      _
    // Predicated region
    $region26: #{tpu_custom_call.1} parent=1 // pred_check
      _
    $region27: #{tpu_custom_call.1} parent=1 // pred_check_branch
      %62 = sbr.rel (0) target = $region29
    $region28: #{tpu_custom_call.1} parent=1 // pred_region
      _
    $region29: #{tpu_custom_call.1} parent=1 // pred_fallthru
      _
    // Predicated region
    $region30: #{tpu_custom_call.1} parent=1 // pred_check
      _
    $region31: #{tpu_custom_call.1} parent=1 // pred_check_branch
      %64 = sbr.rel (0) target = $region33
    $region32: #{tpu_custom_call.1} parent=1 // pred_region
      %65 = dma.done [#allocation5], 512
    $region33: #{tpu_custom_call.1} parent=1 // pred_fallthru
      _
    // Predicated region
    $region34: #{tpu_custom_call.1} parent=1 // pred_check
      _
    $region35: #{tpu_custom_call.1} parent=1 // pred_check_branch
      %67 = sbr.rel (0) target = $region37
    $region36: #{tpu_custom_call.1} parent=1 // pred_region
      %68 = dma.done [#allocation8], 1024
    $region37: #{tpu_custom_call.1} parent=1 // pred_fallthru
      _
    // Predicated region
    $region38: #{tpu_custom_call.1} parent=1 // pred_check
      _
    $region39: #{tpu_custom_call.1} parent=1 // pred_check_branch
      %70 = sbr.rel (0) target = $region41
    $region40: #{tpu_custom_call.1} parent=1 // pred_region
      %71 = dma.done [#allocation8], 512
    $region41: #{tpu_custom_call.1} parent=1 // pred_fallthru
      _
    %v72 = vld [vmem:[#allocation7] sm:$0xff]
    %v73 = vld [vmem:[#allocation7 + $0x8] sm:$0xff]
    %v74 = vld [vmem:[#allocation7 + $0x10] sm:$0xff]
    %v75 = vld [vmem:[#allocation7 + $0x18] sm:$0xff]
    %v76 = vld [vmem:[%s4] sm:$0x1]
    %v77 = vld [vmem:[%s0] sm:$0xff]
    %v78 = vld [vmem:[%s1] sm:$0xf]
    %v79 = vlaneseq
    %v80 = vshrl.u32 %v79, 7
    %v81 = vsub.s32 0, %v80
    %v82 = vrot.slane %v76, %v81
    %vm83 = vcmask 31744
    %v85 = vsel %vm83, %v77, 0
    %vm87 = vcmask 1043456
    %v89 = vsel %vm87, %v78, 0
    %91 = vmatprep.subr.mxu0 0.0
    %92 = vmatpush1.msra.mxu0 %v89
    %93 = vmatprep.subr.mxu0 0.0
    %94 = vmatpush1.msra.mxu0 0.0
    %95 = vmatprep.subr.mxu0 0.0
    %96 = vmatpush1.msra.mxu0 0.0
    %97 = vmatprep.subr.mxu0 0.0
    %98 = vmatpush1.msra.mxu0 0.0
    %99 = vmatprep.subr.mxu0 0.0
    %100 = vmatpush1.msra.mxu0 0.0
    %101 = vmatprep.subr.mxu0 0.0
    %102 = vmatpush1.msra.mxu0 0.0
    %103 = vmatprep.subr.mxu0 0.0
    %104 = vmatpush1.msra.mxu0 0.0
    %105 = vmatprep.subr.mxu0 0.0
    %106 = vmatpush1.msra.mxu0 0.0
    %107 = vmatprep.subr.mxu0 0.0
    %108 = vmatpush1.msra.mxu0 0.0
    %109 = vmatprep.subr.mxu0 0.0
    %110 = vmatpush1.msra.mxu0 0.0
    %111 = vmatprep.subr.mxu0 0.0
    %112 = vmatpush1.msra.mxu0 0.0
    %113 = vmatprep.subr.mxu0 0.0
    %114 = vmatpush1.msra.mxu0 0.0
    %115 = vmatprep.subr.mxu0 0.0
    %116 = vmatpush1.msra.mxu0 0.0
    %117 = vmatprep.subr.mxu0 0.0
    %118 = vmatpush1.msra.mxu0 0.0
    %119 = vmatprep.subr.mxu0 0.0
    %120 = vmatpush1.msra.mxu0 0.0
    %121 = vmatprep.subr.mxu0 0.0
    %122 = vmatpush1.msra.mxu0 0.0
    %123 = vmatprep.subr.mxu0 0.0
    %124 = vmatpush1.msra.mxu0 0.0
    %125 = vmatprep.subr.mxu0 0.0
    %126 = vmatpush1.msra.mxu0 0.0
    %127 = vmatprep.subr.mxu0 0.0
    %128 = vmatpush1.msra.mxu0 0.0
    %129 = vmatprep.subr.mxu0 0.0
    %130 = vmatpush1.msra.mxu0 0.0
    %131 = vmatprep.subr.mxu0 0.0
    %132 = vmatpush1.msra.mxu0 0.0
    %133 = vmatprep.subr.mxu0 0.0
    %134 = vmatpush1.msra.mxu0 0.0
    %135 = vmatprep.subr.mxu0 0.0
    %136 = vmatpush1.msra.mxu0 0.0
    %137 = vmatprep.subr.mxu0 0.0
    %138 = vmatpush1.msra.mxu0 0.0
    %139 = vmatprep.subr.mxu0 0.0
    %140 = vmatpush1.msra.mxu0 0.0
    %141 = vmatprep.subr.mxu0 0.0
    %142 = vmatpush1.msra.mxu0 0.0
    %143 = vmatprep.subr.mxu0 0.0
    %144 = vmatpush1.msra.mxu0 0.0
    %145 = vmatprep.subr.mxu0 0.0
    %146 = vmatpush1.msra.mxu0 0.0
    %147 = vmatprep.subr.mxu0 0.0
    %148 = vmatpush1.msra.mxu0 0.0
    %149 = vmatprep.subr.mxu0 0.0
    %150 = vmatpush1.msra.mxu0 0.0
    %151 = vmatprep.subr.mxu0 0.0
    %152 = vmatpush1.msra.mxu0 0.0
    %153 = vmatprep.subr.mxu0 0.0
    %154 = vmatpush1.msra.mxu0 0.0
    %155 = vmatprep.mubr.f32.mxu0 0.0
    %156 = vmatmul.mubr.f32.gmra.mrb[0].mxu0 %v85
    %v157 = vpop.f32.mrb[0].mxu0
    %v158 = vadd.f32 %v82, %v157
    %v159 = vpop.f32.mrb[0].mxu0
    %160 = vdwg.mxu0
    %161 = vst [vmem:[#allocation3] sm:$0xff] %v158
    %v162 = vld [vmem:[#allocation3] sm:$0xff]
    %vm163 = vcmask 261120
    %v165 = vsel %vm163, 0.0, 0
    %167 = vmatprep.subr.mxu0 0.0
    %168 = vmatpush1.msra.mxu0 %v72
    %169 = vmatprep.subr.mxu0 0.0
    %170 = vmatpush1.msra.mxu0 %v73
    %171 = vmatprep.subr.mxu0 0.0
    %172 = vmatpush1.msra.mxu0 %v74
    %173 = vmatprep.subr.mxu0 0.0
    %174 = vmatpush1.msra.mxu0 %v75
    %175 = vmatprep.subr.mxu0 0.0
    %176 = vmatpush1.msra.mxu0 0.0
    %177 = vmatprep.subr.mxu0 0.0
    %178 = vmatpush1.msra.mxu0 0.0
    %179 = vmatprep.subr.mxu0 0.0
    %180 = vmatpush1.msra.mxu0 0.0
    %181 = vmatprep.subr.mxu0 0.0
    %182 = vmatpush1.msra.mxu0 0.0
    %183 = vmatprep.subr.mxu0 0.0
    %184 = vmatpush1.msra.mxu0 0.0
    %185 = vmatprep.subr.mxu0 0.0
    %186 = vmatpush1.msra.mxu0 0.0
    %187 = vmatprep.subr.mxu0 0.0
    %188 = vmatpush1.msra.mxu0 0.0
    %189 = vmatprep.subr.mxu0 0.0
    %190 = vmatpush1.msra.mxu0 0.0
    %191 = vmatprep.subr.mxu0 0.0
    %192 = vmatpush1.msra.mxu0 0.0
    %193 = vmatprep.subr.mxu0 0.0
    %194 = vmatpush1.msra.mxu0 0.0
    %195 = vmatprep.subr.mxu0 0.0
    %196 = vmatpush1.msra.mxu0 0.0
    %197 = vmatprep.subr.mxu0 0.0
    %198 = vmatpush1.msra.mxu0 0.0
    %199 = vmatprep.subr.mxu0 0.0
    %200 = vmatpush1.msra.mxu0 0.0
    %201 = vmatprep.subr.mxu0 0.0
    %202 = vmatpush1.msra.mxu0 0.0
    %203 = vmatprep.subr.mxu0 0.0
    %204 = vmatpush1.msra.mxu0 0.0
    %205 = vmatprep.subr.mxu0 0.0
    %206 = vmatpush1.msra.mxu0 0.0
    %207 = vmatprep.subr.mxu0 0.0
    %208 = vmatpush1.msra.mxu0 0.0
    %209 = vmatprep.subr.mxu0 0.0
    %210 = vmatpush1.msra.mxu0 0.0
    %211 = vmatprep.subr.mxu0 0.0
    %212 = vmatpush1.msra.mxu0 0.0
    %213 = vmatprep.subr.mxu0 0.0
    %214 = vmatpush1.msra.mxu0 0.0
    %215 = vmatprep.subr.mxu0 0.0
    %216 = vmatpush1.msra.mxu0 0.0
    %217 = vmatprep.subr.mxu0 0.0
    %218 = vmatpush1.msra.mxu0 0.0
    %219 = vmatprep.subr.mxu0 0.0
    %220 = vmatpush1.msra.mxu0 0.0
    %221 = vmatprep.subr.mxu0 0.0
    %222 = vmatpush1.msra.mxu0 0.0
    %223 = vmatprep.subr.mxu0 0.0
    %224 = vmatpush1.msra.mxu0 0.0
    %225 = vmatprep.subr.mxu0 0.0
    %226 = vmatpush1.msra.mxu0 0.0
    %227 = vmatprep.subr.mxu0 0.0
    %228 = vmatpush1.msra.mxu0 0.0
    %229 = vmatprep.subr.mxu0 0.0
    %230 = vmatpush1.msra.mxu0 0.0
    %231 = vmatprep.mubr.f32.mxu0 0.0
    %232 = vmatmul.mubr.f32.gmra.mrb[0].mxu0 %v165
    %v233 = vpop.f32.mrb[0].mxu0
    %v234 = vadd.f32 0.0, %v233
    %v235 = vpop.f32.mrb[0].mxu0
    %236 = vdwg.mxu0
    %v237 = vadd.f32 %v162, %v234
    %v238 = vxor.u32 %v237, 2147483648
    %v239 = vmul.f32 %v238, 1.442695
    %v240 = vpow.pop %v239
    %v241 = vadd.f32 %v240, 1.0
    %v242 = vrcp.pop %v241
    %v243 = vmul.f32 1.0, %v242
    %v244 = vtanh.pop %v237
    %v245 = vmul.f32 %v243, 0.0
    %247 = vrot.lane.b32.xlu0 %v244, 64
    %v248 = vpop.permute.xlu0 %247
    %v250 = vmul.f32 %v243, %v248
    %252 = vrot.lane.b32.xlu0 %v250, 32
    %v253 = vpop.permute.xlu0 %252
    %v255 = vadd.f32 %v245, %v253
    %v256 = vtanh.pop %v255
    %258 = vrot.lane.b32.xlu0 %v256, 64
    %v259 = vpop.permute.xlu0 %258
    %v261 = vmul.f32 %v243, %v259
    %263 = vrot.lane.b32.xlu0 %v261, 32
    %v264 = vpop.permute.xlu0 %263
    %v265 = vsel %vm163, %v264, 0
    %267 = vmatprep.subr.mxu0 0.0
    %268 = vmatpush1.msra.mxu0 %v72
    %269 = vmatprep.subr.mxu0 0.0
    %270 = vmatpush1.msra.mxu0 %v73
    %271 = vmatprep.subr.mxu0 0.0
    %272 = vmatpush1.msra.mxu0 %v74
    %273 = vmatprep.subr.mxu0 0.0
    %274 = vmatpush1.msra.mxu0 %v75
    %275 = vmatprep.subr.mxu0 0.0
    %276 = vmatpush1.msra.mxu0 0.0
    %277 = vmatprep.subr.mxu0 0.0
    %278 = vmatpush1.msra.mxu0 0.0
    %279 = vmatprep.subr.mxu0 0.0
    %280 = vmatpush1.msra.mxu0 0.0
    %281 = vmatprep.subr.mxu0 0.0
    %282 = vmatpush1.msra.mxu0 0.0
    %283 = vmatprep.subr.mxu0 0.0
    %284 = vmatpush1.msra.mxu0 0.0
    %285 = vmatprep.subr.mxu0 0.0
    %286 = vmatpush1.msra.mxu0 0.0
    %287 = vmatprep.subr.mxu0 0.0
    %288 = vmatpush1.msra.mxu0 0.0
    %289 = vmatprep.subr.mxu0 0.0
    %290 = vmatpush1.msra.mxu0 0.0
    %291 = vmatprep.subr.mxu0 0.0
    %292 = vmatpush1.msra.mxu0 0.0
    %293 = vmatprep.subr.mxu0 0.0
    %294 = vmatpush1.msra.mxu0 0.0
    %295 = vmatprep.subr.mxu0 0.0
    %296 = vmatpush1.msra.mxu0 0.0
    %297 = vmatprep.subr.mxu0 0.0
    %298 = vmatpush1.msra.mxu0 0.0
    %299 = vmatprep.subr.mxu0 0.0
    %300 = vmatpush1.msra.mxu0 0.0
    %301 = vmatprep.subr.mxu0 0.0
    %302 = vmatpush1.msra.mxu0 0.0
    %303 = vmatprep.subr.mxu0 0.0
    %304 = vmatpush1.msra.mxu0 0.0
    %305 = vmatprep.subr.mxu0 0.0
    %306 = vmatpush1.msra.mxu0 0.0
    %307 = vmatprep.subr.mxu0 0.0
    %308 = vmatpush1.msra.mxu0 0.0
    %309 = vmatprep.subr.mxu0 0.0
    %310 = vmatpush1.msra.mxu0 0.0
    %311 = vmatprep.subr.mxu0 0.0
    %312 = vmatpush1.msra.mxu0 0.0
    %313 = vmatprep.subr.mxu0 0.0
    %314 = vmatpush1.msra.mxu0 0.0
    %315 = vmatprep.subr.mxu0 0.0
    %316 = vmatpush1.msra.mxu0 0.0
    %317 = vmatprep.subr.mxu0 0.0
    %318 = vmatpush1.msra.mxu0 0.0
    %319 = vmatprep.subr.mxu0 0.0
    %320 = vmatpush1.msra.mxu0 0.0
    %321 = vmatprep.subr.mxu0 0.0
    %322 = vmatpush1.msra.mxu0 0.0
    %323 = vmatprep.subr.mxu0 0.0
    %324 = vmatpush1.msra.mxu0 0.0
    %325 = vmatprep.subr.mxu0 0.0
    %326 = vmatpush1.msra.mxu0 0.0
    %327 = vmatprep.subr.mxu0 0.0
    %328 = vmatpush1.msra.mxu0 0.0
    %329 = vmatprep.subr.mxu0 0.0
    %330 = vmatpush1.msra.mxu0 0.0
    %331 = vmatprep.mubr.f32.mxu0 0.0
    %332 = vmatmul.mubr.f32.gmra.mrb[0].mxu0 %v265
    %v333 = vpop.f32.mrb[0].mxu0
    %v334 = vadd.f32 0.0, %v333
    %v335 = vpop.f32.mrb[0].mxu0
    %336 = vdwg.mxu0
    %v338 = vrot.slane %v334, 7
    %v340 = vadd.f32 %v162, %v338
    %v341 = vxor.u32 %v340, 2147483648
    %v342 = vmul.f32 %v341, 1.442695
    %v343 = vpow.pop %v342
    %v344 = vadd.f32 %v343, 1.0
    %v345 = vrcp.pop %v344
    %v346 = vmul.f32 1.0, %v345
    %v347 = vtanh.pop %v340
    %v349 = vrot.slane %v255, 7
    %v351 = vmul.f32 %v346, %v349
    %353 = vrot.lane.b32.xlu0 %v347, 64
    %v354 = vpop.permute.xlu0 %353
    %v356 = vmul.f32 %v346, %v354
    %358 = vrot.lane.b32.xlu0 %v356, 32
    %v359 = vpop.permute.xlu0 %358
    %v361 = vadd.f32 %v351, %v359
    %v362 = vtanh.pop %v361
    %364 = vrot.lane.b32.xlu0 %v362, 64
    %v365 = vpop.permute.xlu0 %364
    %v367 = vmul.f32 %v346, %v365
    %v369 = vrot.slane %v367, 1
    %370 = vrot.lane.b32.xlu0 %v369, 32
    %v371 = vpop.permute.xlu0 %370
    %v372 = vsel %vm163, %v371, 0
    %374 = vmatprep.subr.mxu0 0.0
    %375 = vmatpush1.msra.mxu0 %v72
    %376 = vmatprep.subr.mxu0 0.0
    %377 = vmatpush1.msra.mxu0 %v73
    %378 = vmatprep.subr.mxu0 0.0
    %379 = vmatpush1.msra.mxu0 %v74
    %380 = vmatprep.subr.mxu0 0.0
    %381 = vmatpush1.msra.mxu0 %v75
    %382 = vmatprep.subr.mxu0 0.0
    %383 = vmatpush1.msra.mxu0 0.0
    %384 = vmatprep.subr.mxu0 0.0
    %385 = vmatpush1.msra.mxu0 0.0
    %386 = vmatprep.subr.mxu0 0.0
    %387 = vmatpush1.msra.mxu0 0.0
    %388 = vmatprep.subr.mxu0 0.0
    %389 = vmatpush1.msra.mxu0 0.0
    %390 = vmatprep.subr.mxu0 0.0
    %391 = vmatpush1.msra.mxu0 0.0
    %392 = vmatprep.subr.mxu0 0.0
    %393 = vmatpush1.msra.mxu0 0.0
    %394 = vmatprep.subr.mxu0 0.0
    %395 = vmatpush1.msra.mxu0 0.0
    %396 = vmatprep.subr.mxu0 0.0
    %397 = vmatpush1.msra.mxu0 0.0
    %398 = vmatprep.subr.mxu0 0.0
    %399 = vmatpush1.msra.mxu0 0.0
    %400 = vmatprep.subr.mxu0 0.0
    %401 = vmatpush1.msra.mxu0 0.0
    %402 = vmatprep.subr.mxu0 0.0
    %403 = vmatpush1.msra.mxu0 0.0
    %404 = vmatprep.subr.mxu0 0.0
    %405 = vmatpush1.msra.mxu0 0.0
    %406 = vmatprep.subr.mxu0 0.0
    %407 = vmatpush1.msra.mxu0 0.0
    %408 = vmatprep.subr.mxu0 0.0
    %409 = vmatpush1.msra.mxu0 0.0
    %410 = vmatprep.subr.mxu0 0.0
    %411 = vmatpush1.msra.mxu0 0.0
    %412 = vmatprep.subr.mxu0 0.0
    %413 = vmatpush1.msra.mxu0 0.0
    %414 = vmatprep.subr.mxu0 0.0
    %415 = vmatpush1.msra.mxu0 0.0
    %416 = vmatprep.subr.mxu0 0.0
    %417 = vmatpush1.msra.mxu0 0.0
    %418 = vmatprep.subr.mxu0 0.0
    %419 = vmatpush1.msra.mxu0 0.0
    %420 = vmatprep.subr.mxu0 0.0
    %421 = vmatpush1.msra.mxu0 0.0
    %422 = vmatprep.subr.mxu0 0.0
    %423 = vmatpush1.msra.mxu0 0.0
    %424 = vmatprep.subr.mxu0 0.0
    %425 = vmatpush1.msra.mxu0 0.0
    %426 = vmatprep.subr.mxu0 0.0
    %427 = vmatpush1.msra.mxu0 0.0
    %428 = vmatprep.subr.mxu0 0.0
    %429 = vmatpush1.msra.mxu0 0.0
    %430 = vmatprep.subr.mxu0 0.0
    %431 = vmatpush1.msra.mxu0 0.0
    %432 = vmatprep.subr.mxu0 0.0
    %433 = vmatpush1.msra.mxu0 0.0
    %434 = vmatprep.subr.mxu0 0.0
    %435 = vmatpush1.msra.mxu0 0.0
    %436 = vmatprep.subr.mxu0 0.0
    %437 = vmatpush1.msra.mxu0 0.0
    %438 = vmatprep.mubr.f32.mxu0 0.0
    %439 = vmatmul.mubr.f32.gmra.mrb[0].mxu0 %v372
    %v440 = vpop.f32.mrb[0].mxu0
    %v441 = vadd.f32 0.0, %v440
    %v442 = vpop.f32.mrb[0].mxu0
    %443 = vdwg.mxu0
    %v445 = vrot.slane %v441, 6
    %v447 = vadd.f32 %v162, %v445
    %v448 = vxor.u32 %v447, 2147483648
    %v449 = vmul.f32 %v448, 1.442695
    %v450 = vpow.pop %v449
    %v451 = vadd.f32 %v450, 1.0
    %v452 = vrcp.pop %v451
    %v453 = vmul.f32 1.0, %v452
    %v454 = vtanh.pop %v447
    %v456 = vrot.slane %v361, 7
    %v458 = vmul.f32 %v453, %v456
    %460 = vrot.lane.b32.xlu0 %v454, 64
    %v461 = vpop.permute.xlu0 %460
    %v463 = vmul.f32 %v453, %v461
    %465 = vrot.lane.b32.xlu0 %v463, 32
    %v466 = vpop.permute.xlu0 %465
    %v468 = vadd.f32 %v458, %v466
    %v469 = vtanh.pop %v468
    %471 = vrot.lane.b32.xlu0 %v469, 64
    %v472 = vpop.permute.xlu0 %471
    %v474 = vmul.f32 %v453, %v472
    %v476 = vrot.slane %v474, 2
    %477 = vrot.lane.b32.xlu0 %v476, 32
    %v478 = vpop.permute.xlu0 %477
    %v479 = vsel %vm163, %v478, 0
    %481 = vmatprep.subr.mxu0 0.0
    %482 = vmatpush1.msra.mxu0 %v72
    %483 = vmatprep.subr.mxu0 0.0
    %484 = vmatpush1.msra.mxu0 %v73
    %485 = vmatprep.subr.mxu0 0.0
    %486 = vmatpush1.msra.mxu0 %v74
    %487 = vmatprep.subr.mxu0 0.0
    %488 = vmatpush1.msra.mxu0 %v75
    %489 = vmatprep.subr.mxu0 0.0
    %490 = vmatpush1.msra.mxu0 0.0
    %491 = vmatprep.subr.mxu0 0.0
    %492 = vmatpush1.msra.mxu0 0.0
    %493 = vmatprep.subr.mxu0 0.0
    %494 = vmatpush1.msra.mxu0 0.0
    %495 = vmatprep.subr.mxu0 0.0
    %496 = vmatpush1.msra.mxu0 0.0
    %497 = vmatprep.subr.mxu0 0.0
    %498 = vmatpush1.msra.mxu0 0.0
    %499 = vmatprep.subr.mxu0 0.0
    %500 = vmatpush1.msra.mxu0 0.0
    %501 = vmatprep.subr.mxu0 0.0
    %502 = vmatpush1.msra.mxu0 0.0
    %503 = vmatprep.subr.mxu0 0.0
    %504 = vmatpush1.msra.mxu0 0.0
    %505 = vmatprep.subr.mxu0 0.0
    %506 = vmatpush1.msra.mxu0 0.0
    %507 = vmatprep.subr.mxu0 0.0
    %508 = vmatpush1.msra.mxu0 0.0
    %509 = vmatprep.subr.mxu0 0.0
    %510 = vmatpush1.msra.mxu0 0.0
    %511 = vmatprep.subr.mxu0 0.0
    %512 = vmatpush1.msra.mxu0 0.0
    %513 = vmatprep.subr.mxu0 0.0
    %514 = vmatpush1.msra.mxu0 0.0
    %515 = vmatprep.subr.mxu0 0.0
    %516 = vmatpush1.msra.mxu0 0.0
    %517 = vmatprep.subr.mxu0 0.0
    %518 = vmatpush1.msra.mxu0 0.0
    %519 = vmatprep.subr.mxu0 0.0
    %520 = vmatpush1.msra.mxu0 0.0
    %521 = vmatprep.subr.mxu0 0.0
    %522 = vmatpush1.msra.mxu0 0.0
    %523 = vmatprep.subr.mxu0 0.0
    %524 = vmatpush1.msra.mxu0 0.0
    %525 = vmatprep.subr.mxu0 0.0
    %526 = vmatpush1.msra.mxu0 0.0
    %527 = vmatprep.subr.mxu0 0.0
    %528 = vmatpush1.msra.mxu0 0.0
    %529 = vmatprep.subr.mxu0 0.0
    %530 = vmatpush1.msra.mxu0 0.0
    %531 = vmatprep.subr.mxu0 0.0
    %532 = vmatpush1.msra.mxu0 0.0
    %533 = vmatprep.subr.mxu0 0.0
    %534 = vmatpush1.msra.mxu0 0.0
    %535 = vmatprep.subr.mxu0 0.0
    %536 = vmatpush1.msra.mxu0 0.0
    %537 = vmatprep.subr.mxu0 0.0
    %538 = vmatpush1.msra.mxu0 0.0
    %539 = vmatprep.subr.mxu0 0.0
    %540 = vmatpush1.msra.mxu0 0.0
    %541 = vmatprep.subr.mxu0 0.0
    %542 = vmatpush1.msra.mxu0 0.0
    %543 = vmatprep.subr.mxu0 0.0
    %544 = vmatpush1.msra.mxu0 0.0
    %545 = vmatprep.mubr.f32.mxu0 0.0
    %546 = vmatmul.mubr.f32.gmra.mrb[0].mxu0 %v479
    %v547 = vpop.f32.mrb[0].mxu0
    %v548 = vadd.f32 0.0, %v547
    %v549 = vpop.f32.mrb[0].mxu0
    %550 = vdwg.mxu0
    %v552 = vrot.slane %v548, 5
    %v554 = vadd.f32 %v162, %v552
    %v555 = vxor.u32 %v554, 2147483648
    %v556 = vmul.f32 %v555, 1.442695
    %v557 = vpow.pop %v556
    %v558 = vadd.f32 %v557, 1.0
    %v559 = vrcp.pop %v558
    %v560 = vmul.f32 1.0, %v559
    %v561 = vtanh.pop %v554
    %v563 = vrot.slane %v468, 7
    %v565 = vmul.f32 %v560, %v563
    %567 = vrot.lane.b32.xlu0 %v561, 64
    %v568 = vpop.permute.xlu0 %567
    %v570 = vmul.f32 %v560, %v568
    %572 = vrot.lane.b32.xlu0 %v570, 32
    %v573 = vpop.permute.xlu0 %572
    %v575 = vadd.f32 %v565, %v573
    %v576 = vtanh.pop %v575
    %578 = vrot.lane.b32.xlu0 %v576, 64
    %v579 = vpop.permute.xlu0 %578
    %v581 = vmul.f32 %v560, %v579
    %v583 = vrot.slane %v581, 3
    %584 = vrot.lane.b32.xlu0 %v583, 32
    %v585 = vpop.permute.xlu0 %584
    %v586 = vsel %vm163, %v585, 0
    %588 = vmatprep.subr.mxu0 0.0
    %589 = vmatpush1.msra.mxu0 %v72
    %590 = vmatprep.subr.mxu0 0.0
    %591 = vmatpush1.msra.mxu0 %v73
    %592 = vmatprep.subr.mxu0 0.0
    %593 = vmatpush1.msra.mxu0 %v74
    %594 = vmatprep.subr.mxu0 0.0
    %595 = vmatpush1.msra.mxu0 %v75
    %596 = vmatprep.subr.mxu0 0.0
    %597 = vmatpush1.msra.mxu0 0.0
    %598 = vmatprep.subr.mxu0 0.0
    %599 = vmatpush1.msra.mxu0 0.0
    %600 = vmatprep.subr.mxu0 0.0
    %601 = vmatpush1.msra.mxu0 0.0
    %602 = vmatprep.subr.mxu0 0.0
    %603 = vmatpush1.msra.mxu0 0.0
    %604 = vmatprep.subr.mxu0 0.0
    %605 = vmatpush1.msra.mxu0 0.0
    %606 = vmatprep.subr.mxu0 0.0
    %607 = vmatpush1.msra.mxu0 0.0
    %608 = vmatprep.subr.mxu0 0.0
    %609 = vmatpush1.msra.mxu0 0.0
    %610 = vmatprep.subr.mxu0 0.0
    %611 = vmatpush1.msra.mxu0 0.0
    %612 = vmatprep.subr.mxu0 0.0
    %613 = vmatpush1.msra.mxu0 0.0
    %614 = vmatprep.subr.mxu0 0.0
    %615 = vmatpush1.msra.mxu0 0.0
    %616 = vmatprep.subr.mxu0 0.0
    %617 = vmatpush1.msra.mxu0 0.0
    %618 = vmatprep.subr.mxu0 0.0
    %619 = vmatpush1.msra.mxu0 0.0
    %620 = vmatprep.subr.mxu0 0.0
    %621 = vmatpush1.msra.mxu0 0.0
    %622 = vmatprep.subr.mxu0 0.0
    %623 = vmatpush1.msra.mxu0 0.0
    %624 = vmatprep.subr.mxu0 0.0
    %625 = vmatpush1.msra.mxu0 0.0
    %626 = vmatprep.subr.mxu0 0.0
    %627 = vmatpush1.msra.mxu0 0.0
    %628 = vmatprep.subr.mxu0 0.0
    %629 = vmatpush1.msra.mxu0 0.0
    %630 = vmatprep.subr.mxu0 0.0
    %631 = vmatpush1.msra.mxu0 0.0
    %632 = vmatprep.subr.mxu0 0.0
    %633 = vmatpush1.msra.mxu0 0.0
    %634 = vmatprep.subr.mxu0 0.0
    %635 = vmatpush1.msra.mxu0 0.0
    %636 = vmatprep.subr.mxu0 0.0
    %637 = vmatpush1.msra.mxu0 0.0
    %638 = vmatprep.subr.mxu0 0.0
    %639 = vmatpush1.msra.mxu0 0.0
    %640 = vmatprep.subr.mxu0 0.0
    %641 = vmatpush1.msra.mxu0 0.0
    %642 = vmatprep.subr.mxu0 0.0
    %643 = vmatpush1.msra.mxu0 0.0
    %644 = vmatprep.subr.mxu0 0.0
    %645 = vmatpush1.msra.mxu0 0.0
    %646 = vmatprep.subr.mxu0 0.0
    %647 = vmatpush1.msra.mxu0 0.0
    %648 = vmatprep.subr.mxu0 0.0
    %649 = vmatpush1.msra.mxu0 0.0
    %650 = vmatprep.subr.mxu0 0.0
    %651 = vmatpush1.msra.mxu0 0.0
    %652 = vmatprep.mubr.f32.mxu0 0.0
    %653 = vmatmul.mubr.f32.gmra.mrb[0].mxu0 %v586
    %v654 = vpop.f32.mrb[0].mxu0
    %v655 = vadd.f32 0.0, %v654
    %v656 = vpop.f32.mrb[0].mxu0
    %657 = vdwg.mxu0
    %v659 = vrot.slane %v655, 4
    %v661 = vadd.f32 %v162, %v659
    %v662 = vxor.u32 %v661, 2147483648
    %v663 = vmul.f32 %v662, 1.442695
    %v664 = vpow.pop %v663
    %v665 = vadd.f32 %v664, 1.0
    %v666 = vrcp.pop %v665
    %v667 = vmul.f32 1.0, %v666
    %v668 = vtanh.pop %v661
    %v670 = vrot.slane %v575, 7
    %v672 = vmul.f32 %v667, %v670
    %674 = vrot.lane.b32.xlu0 %v668, 64
    %v675 = vpop.permute.xlu0 %674
    %v677 = vmul.f32 %v667, %v675
    %679 = vrot.lane.b32.xlu0 %v677, 32
    %v680 = vpop.permute.xlu0 %679
    %v682 = vadd.f32 %v672, %v680
    %v683 = vtanh.pop %v682
    %685 = vrot.lane.b32.xlu0 %v683, 64
    %v686 = vpop.permute.xlu0 %685
    %v688 = vmul.f32 %v667, %v686
    %v690 = vrot.slane %v688, 4
    %691 = vrot.lane.b32.xlu0 %v690, 32
    %v692 = vpop.permute.xlu0 %691
    %v693 = vsel %vm163, %v692, 0
    %695 = vmatprep.subr.mxu0 0.0
    %696 = vmatpush1.msra.mxu0 %v72
    %697 = vmatprep.subr.mxu0 0.0
    %698 = vmatpush1.msra.mxu0 %v73
    %699 = vmatprep.subr.mxu0 0.0
    %700 = vmatpush1.msra.mxu0 %v74
    %701 = vmatprep.subr.mxu0 0.0
    %702 = vmatpush1.msra.mxu0 %v75
    %703 = vmatprep.subr.mxu0 0.0
    %704 = vmatpush1.msra.mxu0 0.0
    %705 = vmatprep.subr.mxu0 0.0
    %706 = vmatpush1.msra.mxu0 0.0
    %707 = vmatprep.subr.mxu0 0.0
    %708 = vmatpush1.msra.mxu0 0.0
    %709 = vmatprep.subr.mxu0 0.0
    %710 = vmatpush1.msra.mxu0 0.0
    %711 = vmatprep.subr.mxu0 0.0
    %712 = vmatpush1.msra.mxu0 0.0
    %713 = vmatprep.subr.mxu0 0.0
    %714 = vmatpush1.msra.mxu0 0.0
    %715 = vmatprep.subr.mxu0 0.0
    %716 = vmatpush1.msra.mxu0 0.0
    %717 = vmatprep.subr.mxu0 0.0
    %718 = vmatpush1.msra.mxu0 0.0
    %719 = vmatprep.subr.mxu0 0.0
    %720 = vmatpush1.msra.mxu0 0.0
    %721 = vmatprep.subr.mxu0 0.0
    %722 = vmatpush1.msra.mxu0 0.0
    %723 = vmatprep.subr.mxu0 0.0
    %724 = vmatpush1.msra.mxu0 0.0
    %725 = vmatprep.subr.mxu0 0.0
    %726 = vmatpush1.msra.mxu0 0.0
    %727 = vmatprep.subr.mxu0 0.0
    %728 = vmatpush1.msra.mxu0 0.0
    %729 = vmatprep.subr.mxu0 0.0
    %730 = vmatpush1.msra.mxu0 0.0
    %731 = vmatprep.subr.mxu0 0.0
    %732 = vmatpush1.msra.mxu0 0.0
    %733 = vmatprep.subr.mxu0 0.0
    %734 = vmatpush1.msra.mxu0 0.0
    %735 = vmatprep.subr.mxu0 0.0
    %736 = vmatpush1.msra.mxu0 0.0
    %737 = vmatprep.subr.mxu0 0.0
    %738 = vmatpush1.msra.mxu0 0.0
    %739 = vmatprep.subr.mxu0 0.0
    %740 = vmatpush1.msra.mxu0 0.0
    %741 = vmatprep.subr.mxu0 0.0
    %742 = vmatpush1.msra.mxu0 0.0
    %743 = vmatprep.subr.mxu0 0.0
    %744 = vmatpush1.msra.mxu0 0.0
    %745 = vmatprep.subr.mxu0 0.0
    %746 = vmatpush1.msra.mxu0 0.0
    %747 = vmatprep.subr.mxu0 0.0
    %748 = vmatpush1.msra.mxu0 0.0
    %749 = vmatprep.subr.mxu0 0.0
    %750 = vmatpush1.msra.mxu0 0.0
    %751 = vmatprep.subr.mxu0 0.0
    %752 = vmatpush1.msra.mxu0 0.0
    %753 = vmatprep.subr.mxu0 0.0
    %754 = vmatpush1.msra.mxu0 0.0
    %755 = vmatprep.subr.mxu0 0.0
    %756 = vmatpush1.msra.mxu0 0.0
    %757 = vmatprep.subr.mxu0 0.0
    %758 = vmatpush1.msra.mxu0 0.0
    %759 = vmatprep.mubr.f32.mxu0 0.0
    %760 = vmatmul.mubr.f32.gmra.mrb[0].mxu0 %v693
    %v761 = vpop.f32.mrb[0].mxu0
    %v762 = vadd.f32 0.0, %v761
    %v763 = vpop.f32.mrb[0].mxu0
    %764 = vdwg.mxu0
    %v766 = vrot.slane %v762, 3
    %v768 = vadd.f32 %v162, %v766
    %v769 = vxor.u32 %v768, 2147483648
    %v770 = vmul.f32 %v769, 1.442695
    %v771 = vpow.pop %v770
    %v772 = vadd.f32 %v771, 1.0
    %v773 = vrcp.pop %v772
    %v774 = vmul.f32 1.0, %v773
    %v775 = vtanh.pop %v768
    %v777 = vrot.slane %v682, 7
    %v779 = vmul.f32 %v774, %v777
    %781 = vrot.lane.b32.xlu0 %v775, 64
    %v782 = vpop.permute.xlu0 %781
    %v784 = vmul.f32 %v774, %v782
    %786 = vrot.lane.b32.xlu0 %v784, 32
    %v787 = vpop.permute.xlu0 %786
    %v789 = vadd.f32 %v779, %v787
    %v790 = vtanh.pop %v789
    %792 = vrot.lane.b32.xlu0 %v790, 64
    %v793 = vpop.permute.xlu0 %792
    %v795 = vmul.f32 %v774, %v793
    %v797 = vrot.slane %v795, 5
    %798 = vrot.lane.b32.xlu0 %v797, 32
    %v799 = vpop.permute.xlu0 %798
    %v800 = vsel %vm163, %v799, 0
    %802 = vmatprep.subr.mxu0 0.0
    %803 = vmatpush1.msra.mxu0 %v72
    %804 = vmatprep.subr.mxu0 0.0
    %805 = vmatpush1.msra.mxu0 %v73
    %806 = vmatprep.subr.mxu0 0.0
    %807 = vmatpush1.msra.mxu0 %v74
    %808 = vmatprep.subr.mxu0 0.0
    %809 = vmatpush1.msra.mxu0 %v75
    %810 = vmatprep.subr.mxu0 0.0
    %811 = vmatpush1.msra.mxu0 0.0
    %812 = vmatprep.subr.mxu0 0.0
    %813 = vmatpush1.msra.mxu0 0.0
    %814 = vmatprep.subr.mxu0 0.0
    %815 = vmatpush1.msra.mxu0 0.0
    %816 = vmatprep.subr.mxu0 0.0
    %817 = vmatpush1.msra.mxu0 0.0
    %818 = vmatprep.subr.mxu0 0.0
    %819 = vmatpush1.msra.mxu0 0.0
    %820 = vmatprep.subr.mxu0 0.0
    %821 = vmatpush1.msra.mxu0 0.0
    %822 = vmatprep.subr.mxu0 0.0
    %823 = vmatpush1.msra.mxu0 0.0
    %824 = vmatprep.subr.mxu0 0.0
    %825 = vmatpush1.msra.mxu0 0.0
    %826 = vmatprep.subr.mxu0 0.0
    %827 = vmatpush1.msra.mxu0 0.0
    %828 = vmatprep.subr.mxu0 0.0
    %829 = vmatpush1.msra.mxu0 0.0
    %830 = vmatprep.subr.mxu0 0.0
    %831 = vmatpush1.msra.mxu0 0.0
    %832 = vmatprep.subr.mxu0 0.0
    %833 = vmatpush1.msra.mxu0 0.0
    %834 = vmatprep.subr.mxu0 0.0
    %835 = vmatpush1.msra.mxu0 0.0
    %836 = vmatprep.subr.mxu0 0.0
    %837 = vmatpush1.msra.mxu0 0.0
    %838 = vmatprep.subr.mxu0 0.0
    %839 = vmatpush1.msra.mxu0 0.0
    %840 = vmatprep.subr.mxu0 0.0
    %841 = vmatpush1.msra.mxu0 0.0
    %842 = vmatprep.subr.mxu0 0.0
    %843 = vmatpush1.msra.mxu0 0.0
    %844 = vmatprep.subr.mxu0 0.0
    %845 = vmatpush1.msra.mxu0 0.0
    %846 = vmatprep.subr.mxu0 0.0
    %847 = vmatpush1.msra.mxu0 0.0
    %848 = vmatprep.subr.mxu0 0.0
    %849 = vmatpush1.msra.mxu0 0.0
    %850 = vmatprep.subr.mxu0 0.0
    %851 = vmatpush1.msra.mxu0 0.0
    %852 = vmatprep.subr.mxu0 0.0
    %853 = vmatpush1.msra.mxu0 0.0
    %854 = vmatprep.subr.mxu0 0.0
    %855 = vmatpush1.msra.mxu0 0.0
    %856 = vmatprep.subr.mxu0 0.0
    %857 = vmatpush1.msra.mxu0 0.0
    %858 = vmatprep.subr.mxu0 0.0
    %859 = vmatpush1.msra.mxu0 0.0
    %860 = vmatprep.subr.mxu0 0.0
    %861 = vmatpush1.msra.mxu0 0.0
    %862 = vmatprep.subr.mxu0 0.0
    %863 = vmatpush1.msra.mxu0 0.0
    %864 = vmatprep.subr.mxu0 0.0
    %865 = vmatpush1.msra.mxu0 0.0
    %866 = vmatprep.mubr.f32.mxu0 0.0
    %867 = vmatmul.mubr.f32.gmra.mrb[0].mxu0 %v800
    %v868 = vpop.f32.mrb[0].mxu0
    %v869 = vadd.f32 0.0, %v868
    %v870 = vpop.f32.mrb[0].mxu0
    %871 = vdwg.mxu0
    %v873 = vrot.slane %v869, 2
    %v875 = vadd.f32 %v162, %v873
    %v876 = vxor.u32 %v875, 2147483648
    %v877 = vmul.f32 %v876, 1.442695
    %v878 = vpow.pop %v877
    %v879 = vadd.f32 %v878, 1.0
    %v880 = vrcp.pop %v879
    %v881 = vmul.f32 1.0, %v880
    %v882 = vtanh.pop %v875
    %v884 = vrot.slane %v789, 7
    %v886 = vmul.f32 %v881, %v884
    %888 = vrot.lane.b32.xlu0 %v882, 64
    %v889 = vpop.permute.xlu0 %888
    %v891 = vmul.f32 %v881, %v889
    %893 = vrot.lane.b32.xlu0 %v891, 32
    %v894 = vpop.permute.xlu0 %893
    %v896 = vadd.f32 %v886, %v894
    %v897 = vtanh.pop %v896
    %899 = vrot.lane.b32.xlu0 %v897, 64
    %v900 = vpop.permute.xlu0 %899
    %v902 = vmul.f32 %v881, %v900
    %v904 = vrot.slane %v902, 6
    %905 = vrot.lane.b32.xlu0 %v904, 32
    %v906 = vpop.permute.xlu0 %905
    %v907 = vsel %vm163, %v906, 0
    %909 = vmatprep.subr.mxu0 0.0
    %910 = vmatpush1.msra.mxu0 %v72
    %911 = vmatprep.subr.mxu0 0.0
    %912 = vmatpush1.msra.mxu0 %v73
    %913 = vmatprep.subr.mxu0 0.0
    %914 = vmatpush1.msra.mxu0 %v74
    %915 = vmatprep.subr.mxu0 0.0
    %916 = vmatpush1.msra.mxu0 %v75
    %917 = vmatprep.subr.mxu0 0.0
    %918 = vmatpush1.msra.mxu0 0.0
    %919 = vmatprep.subr.mxu0 0.0
    %920 = vmatpush1.msra.mxu0 0.0
    %921 = vmatprep.subr.mxu0 0.0
    %922 = vmatpush1.msra.mxu0 0.0
    %923 = vmatprep.subr.mxu0 0.0
    %924 = vmatpush1.msra.mxu0 0.0
    %925 = vmatprep.subr.mxu0 0.0
    %926 = vmatpush1.msra.mxu0 0.0
    %927 = vmatprep.subr.mxu0 0.0
    %928 = vmatpush1.msra.mxu0 0.0
    %929 = vmatprep.subr.mxu0 0.0
    %930 = vmatpush1.msra.mxu0 0.0
    %931 = vmatprep.subr.mxu0 0.0
    %932 = vmatpush1.msra.mxu0 0.0
    %933 = vmatprep.subr.mxu0 0.0
    %934 = vmatpush1.msra.mxu0 0.0
    %935 = vmatprep.subr.mxu0 0.0
    %936 = vmatpush1.msra.mxu0 0.0
    %937 = vmatprep.subr.mxu0 0.0
    %938 = vmatpush1.msra.mxu0 0.0
    %939 = vmatprep.subr.mxu0 0.0
    %940 = vmatpush1.msra.mxu0 0.0
    %941 = vmatprep.subr.mxu0 0.0
    %942 = vmatpush1.msra.mxu0 0.0
    %943 = vmatprep.subr.mxu0 0.0
    %944 = vmatpush1.msra.mxu0 0.0
    %945 = vmatprep.subr.mxu0 0.0
    %946 = vmatpush1.msra.mxu0 0.0
    %947 = vmatprep.subr.mxu0 0.0
    %948 = vmatpush1.msra.mxu0 0.0
    %949 = vmatprep.subr.mxu0 0.0
    %950 = vmatpush1.msra.mxu0 0.0
    %951 = vmatprep.subr.mxu0 0.0
    %952 = vmatpush1.msra.mxu0 0.0
    %953 = vmatprep.subr.mxu0 0.0
    %954 = vmatpush1.msra.mxu0 0.0
    %955 = vmatprep.subr.mxu0 0.0
    %956 = vmatpush1.msra.mxu0 0.0
    %957 = vmatprep.subr.mxu0 0.0
    %958 = vmatpush1.msra.mxu0 0.0
    %959 = vmatprep.subr.mxu0 0.0
    %960 = vmatpush1.msra.mxu0 0.0
    %961 = vmatprep.subr.mxu0 0.0
    %962 = vmatpush1.msra.mxu0 0.0
    %963 = vmatprep.subr.mxu0 0.0
    %964 = vmatpush1.msra.mxu0 0.0
    %965 = vmatprep.subr.mxu0 0.0
    %966 = vmatpush1.msra.mxu0 0.0
    %967 = vmatprep.subr.mxu0 0.0
    %968 = vmatpush1.msra.mxu0 0.0
    %969 = vmatprep.subr.mxu0 0.0
    %970 = vmatpush1.msra.mxu0 0.0
    %971 = vmatprep.subr.mxu0 0.0
    %972 = vmatpush1.msra.mxu0 0.0
    %973 = vmatprep.mubr.f32.mxu0 0.0
    %974 = vmatmul.mubr.f32.gmra.mrb[0].mxu0 %v907
    %v975 = vpop.f32.mrb[0].mxu0
    %v976 = vadd.f32 0.0, %v975
    %v977 = vpop.f32.mrb[0].mxu0
    %978 = vdwg.mxu0
    %v980 = vrot.slane %v976, 1
    %v982 = vadd.f32 %v162, %v980
    %v983 = vxor.u32 %v982, 2147483648
    %v984 = vmul.f32 %v983, 1.442695
    %v985 = vpow.pop %v984
    %v986 = vadd.f32 %v985, 1.0
    %v987 = vrcp.pop %v986
    %v988 = vmul.f32 1.0, %v987
    %v989 = vtanh.pop %v982
    %v991 = vrot.slane %v896, 7
    %v993 = vmul.f32 %v988, %v991
    %995 = vrot.lane.b32.xlu0 %v989, 64
    %v996 = vpop.permute.xlu0 %995
    %v998 = vmul.f32 %v988, %v996
    %1000 = vrot.lane.b32.xlu0 %v998, 32
    %v1001 = vpop.permute.xlu0 %1000
    %v1003 = vadd.f32 %v993, %v1001
    %v1004 = vtanh.pop %v1003
    %1006 = vrot.lane.b32.xlu0 %v1004, 64
    %v1007 = vpop.permute.xlu0 %1006
    %v1009 = vmul.f32 %v988, %v1007
    %vm1010 = vcmask 1040384
    %v1011 = vsel %vm1010, %v261, %v367
    %vm1012 = vcmask 1041408
    %v1013 = vsel %vm1012, %v1011, %v474
    %vm1014 = vcmask 1042432
    %v1015 = vsel %vm1014, %v1013, %v581
    %v1016 = vsel %vm87, %v1015, %v688
    %vm1017 = vcmask 1044480
    %v1018 = vsel %vm1017, %v1016, %v795
    %vm1019 = vcmask 1045504
    %v1020 = vsel %vm1019, %v1018, %v902
    %vm1021 = vcmask 1046528
    %v1022 = vsel %vm1021, %v1020, %v1009
    %1024 = vrot.lane.b32.xlu0 %v1022, 32
    %v1025 = vpop.permute.xlu0 %1024
    %1027 = vst.msk [vmem:[#allocation2] sm:$0xff] %vm163, %v1025
    %1029 = vrot.lane.b32.xlu0 %v1009, 32
    %v1030 = vpop.permute.xlu0 %1029
    %vm1032 = vcmask 261127
    %1033 = vst.msk [vmem:[#allocation11 - $0x7] sm:$0x80] %vm1032, %v1030
    %1035 = vrot.lane.b32.xlu0 %v1003, 96
    %v1036 = vpop.permute.xlu0 %1035
    %1038 = vst.msk [vmem:[#allocation13 - $0x7] sm:$0x80] %vm1032, %v1036
    %s1039 = scalar_lea.vmem [#allocation7], 32
    %v1040 = vld [vmem:[%s1039] sm:$0xff]
    %v1041 = vld [vmem:[%s1039 + $0x8] sm:$0xff]
    %v1042 = vld [vmem:[%s1039 + $0x10] sm:$0xff]
    %v1043 = vld [vmem:[%s1039 + $0x18] sm:$0xff]
    %v1044 = vld [vmem:[%s4 + $0x1] sm:$0x1]
    %v1045 = vld [vmem:[#allocation2] sm:$0xff]
    %v1046 = vld [vmem:[#allocation4] sm:$0xff]
    %v1047 = vld [vmem:[#allocation4 + $0x8] sm:$0xff]
    %v1048 = vld [vmem:[#allocation4 + $0x10] sm:$0xff]
    %v1049 = vld [vmem:[#allocation4 + $0x18] sm:$0xff]
    %v1050 = vlaneseq
    %v1051 = vshrl.u32 %v1050, 7
    %v1052 = vsub.s32 0, %v1051
    %v1053 = vrot.slane %v1044, %v1052
    %v1055 = vsel %vm163, %v1045, 0
    %1057 = vmatprep.subr.mxu0 0.0
    %1058 = vmatpush1.msra.mxu0 %v1046
    %1059 = vmatprep.subr.mxu0 0.0
    %1060 = vmatpush1.msra.mxu0 %v1047
    %1061 = vmatprep.subr.mxu0 0.0
    %1062 = vmatpush1.msra.mxu0 %v1048
    %1063 = vmatprep.subr.mxu0 0.0
    %1064 = vmatpush1.msra.mxu0 %v1049
    %1065 = vmatprep.subr.mxu0 0.0
    %1066 = vmatpush1.msra.mxu0 0.0
    %1067 = vmatprep.subr.mxu0 0.0
    %1068 = vmatpush1.msra.mxu0 0.0
    %1069 = vmatprep.subr.mxu0 0.0
    %1070 = vmatpush1.msra.mxu0 0.0
    %1071 = vmatprep.subr.mxu0 0.0
    %1072 = vmatpush1.msra.mxu0 0.0
    %1073 = vmatprep.subr.mxu0 0.0
    %1074 = vmatpush1.msra.mxu0 0.0
    %1075 = vmatprep.subr.mxu0 0.0
    %1076 = vmatpush1.msra.mxu0 0.0
    %1077 = vmatprep.subr.mxu0 0.0
    %1078 = vmatpush1.msra.mxu0 0.0
    %1079 = vmatprep.subr.mxu0 0.0
    %1080 = vmatpush1.msra.mxu0 0.0
    %1081 = vmatprep.subr.mxu0 0.0
    %1082 = vmatpush1.msra.mxu0 0.0
    %1083 = vmatprep.subr.mxu0 0.0
    %1084 = vmatpush1.msra.mxu0 0.0
    %1085 = vmatprep.subr.mxu0 0.0
    %1086 = vmatpush1.msra.mxu0 0.0
    %1087 = vmatprep.subr.mxu0 0.0
    %1088 = vmatpush1.msra.mxu0 0.0
    %1089 = vmatprep.subr.mxu0 0.0
    %1090 = vmatpush1.msra.mxu0 0.0
    %1091 = vmatprep.subr.mxu0 0.0
    %1092 = vmatpush1.msra.mxu0 0.0
    %1093 = vmatprep.subr.mxu0 0.0
    %1094 = vmatpush1.msra.mxu0 0.0
    %1095 = vmatprep.subr.mxu0 0.0
    %1096 = vmatpush1.msra.mxu0 0.0
    %1097 = vmatprep.subr.mxu0 0.0
    %1098 = vmatpush1.msra.mxu0 0.0
    %1099 = vmatprep.subr.mxu0 0.0
    %1100 = vmatpush1.msra.mxu0 0.0
    %1101 = vmatprep.subr.mxu0 0.0
    %1102 = vmatpush1.msra.mxu0 0.0
    %1103 = vmatprep.subr.mxu0 0.0
    %1104 = vmatpush1.msra.mxu0 0.0
    %1105 = vmatprep.subr.mxu0 0.0
    %1106 = vmatpush1.msra.mxu0 0.0
    %1107 = vmatprep.subr.mxu0 0.0
    %1108 = vmatpush1.msra.mxu0 0.0
    %1109 = vmatprep.subr.mxu0 0.0
    %1110 = vmatpush1.msra.mxu0 0.0
    %1111 = vmatprep.subr.mxu0 0.0
    %1112 = vmatpush1.msra.mxu0 0.0
    %1113 = vmatprep.subr.mxu0 0.0
    %1114 = vmatpush1.msra.mxu0 0.0
    %1115 = vmatprep.subr.mxu0 0.0
    %1116 = vmatpush1.msra.mxu0 0.0
    %1117 = vmatprep.subr.mxu0 0.0
    %1118 = vmatpush1.msra.mxu0 0.0
    %1119 = vmatprep.subr.mxu0 0.0
    %1120 = vmatpush1.msra.mxu0 0.0
    %1121 = vmatprep.mubr.f32.mxu0 0.0
    %1122 = vmatmul.mubr.f32.gmra.mrb[0].mxu0 %v1055
    %v1123 = vpop.f32.mrb[0].mxu0
    %v1124 = vadd.f32 %v1053, %v1123
    %v1125 = vpop.f32.mrb[0].mxu0
    %1126 = vdwg.mxu0
    %1127 = vst [vmem:[#allocation3] sm:$0xff] %v1124
    %v1128 = vld [vmem:[#allocation3] sm:$0xff]
    %1129 = vmatprep.subr.mxu0 0.0
    %1130 = vmatpush1.msra.mxu0 %v1040
    %1131 = vmatprep.subr.mxu0 0.0
    %1132 = vmatpush1.msra.mxu0 %v1041
    %1133 = vmatprep.subr.mxu0 0.0
    %1134 = vmatpush1.msra.mxu0 %v1042
    %1135 = vmatprep.subr.mxu0 0.0
    %1136 = vmatpush1.msra.mxu0 %v1043
    %1137 = vmatprep.subr.mxu0 0.0
    %1138 = vmatpush1.msra.mxu0 0.0
    %1139 = vmatprep.subr.mxu0 0.0
    %1140 = vmatpush1.msra.mxu0 0.0
    %1141 = vmatprep.subr.mxu0 0.0
    %1142 = vmatpush1.msra.mxu0 0.0
    %1143 = vmatprep.subr.mxu0 0.0
    %1144 = vmatpush1.msra.mxu0 0.0
    %1145 = vmatprep.subr.mxu0 0.0
    %1146 = vmatpush1.msra.mxu0 0.0
    %1147 = vmatprep.subr.mxu0 0.0
    %1148 = vmatpush1.msra.mxu0 0.0
    %1149 = vmatprep.subr.mxu0 0.0
    %1150 = vmatpush1.msra.mxu0 0.0
    %1151 = vmatprep.subr.mxu0 0.0
    %1152 = vmatpush1.msra.mxu0 0.0
    %1153 = vmatprep.subr.mxu0 0.0
    %1154 = vmatpush1.msra.mxu0 0.0
    %1155 = vmatprep.subr.mxu0 0.0
    %1156 = vmatpush1.msra.mxu0 0.0
    %1157 = vmatprep.subr.mxu0 0.0
    %1158 = vmatpush1.msra.mxu0 0.0
    %1159 = vmatprep.subr.mxu0 0.0
    %1160 = vmatpush1.msra.mxu0 0.0
    %1161 = vmatprep.subr.mxu0 0.0
    %1162 = vmatpush1.msra.mxu0 0.0
    %1163 = vmatprep.subr.mxu0 0.0
    %1164 = vmatpush1.msra.mxu0 0.0
    %1165 = vmatprep.subr.mxu0 0.0
    %1166 = vmatpush1.msra.mxu0 0.0
    %1167 = vmatprep.subr.mxu0 0.0
    %1168 = vmatpush1.msra.mxu0 0.0
    %1169 = vmatprep.subr.mxu0 0.0
    %1170 = vmatpush1.msra.mxu0 0.0
    %1171 = vmatprep.subr.mxu0 0.0
    %1172 = vmatpush1.msra.mxu0 0.0
    %1173 = vmatprep.subr.mxu0 0.0
    %1174 = vmatpush1.msra.mxu0 0.0
    %1175 = vmatprep.subr.mxu0 0.0
    %1176 = vmatpush1.msra.mxu0 0.0
    %1177 = vmatprep.subr.mxu0 0.0
    %1178 = vmatpush1.msra.mxu0 0.0
    %1179 = vmatprep.subr.mxu0 0.0
    %1180 = vmatpush1.msra.mxu0 0.0
    %1181 = vmatprep.subr.mxu0 0.0
    %1182 = vmatpush1.msra.mxu0 0.0
    %1183 = vmatprep.subr.mxu0 0.0
    %1184 = vmatpush1.msra.mxu0 0.0
    %1185 = vmatprep.subr.mxu0 0.0
    %1186 = vmatpush1.msra.mxu0 0.0
    %1187 = vmatprep.subr.mxu0 0.0
    %1188 = vmatpush1.msra.mxu0 0.0
    %1189 = vmatprep.subr.mxu0 0.0
    %1190 = vmatpush1.msra.mxu0 0.0
    %1191 = vmatprep.subr.mxu0 0.0
    %1192 = vmatpush1.msra.mxu0 0.0
    %1193 = vmatprep.mubr.f32.mxu0 0.0
    %1194 = vmatmul.mubr.f32.gmra.mrb[0].mxu0 %v165
    %v1195 = vpop.f32.mrb[0].mxu0
    %v1196 = vadd.f32 0.0, %v1195
    %v1197 = vpop.f32.mrb[0].mxu0
    %1198 = vdwg.mxu0
    %v1199 = vadd.f32 %v1128, %v1196
    %v1200 = vxor.u32 %v1199, 2147483648
    %v1201 = vmul.f32 %v1200, 1.442695
    %v1202 = vpow.pop %v1201
    %v1203 = vadd.f32 %v1202, 1.0
    %v1204 = vrcp.pop %v1203
    %v1205 = vmul.f32 1.0, %v1204
    %v1206 = vtanh.pop %v1199
    %v1207 = vmul.f32 %v1205, 0.0
    %1209 = vrot.lane.b32.xlu0 %v1206, 64
    %v1210 = vpop.permute.xlu0 %1209
    %v1212 = vmul.f32 %v1205, %v1210
    %1214 = vrot.lane.b32.xlu0 %v1212, 32
    %v1215 = vpop.permute.xlu0 %1214
    %v1217 = vadd.f32 %v1207, %v1215
    %v1218 = vtanh.pop %v1217
    %1220 = vrot.lane.b32.xlu0 %v1218, 64
    %v1221 = vpop.permute.xlu0 %1220
    %v1223 = vmul.f32 %v1205, %v1221
    %1225 = vrot.lane.b32.xlu0 %v1223, 32
    %v1226 = vpop.permute.xlu0 %1225
    %v1227 = vsel %vm163, %v1226, 0
    %1229 = vmatprep.subr.mxu0 0.0
    %1230 = vmatpush1.msra.mxu0 %v1040
    %1231 = vmatprep.subr.mxu0 0.0
    %1232 = vmatpush1.msra.mxu0 %v1041
    %1233 = vmatprep.subr.mxu0 0.0
    %1234 = vmatpush1.msra.mxu0 %v1042
    %1235 = vmatprep.subr.mxu0 0.0
    %1236 = vmatpush1.msra.mxu0 %v1043
    %1237 = vmatprep.subr.mxu0 0.0
    %1238 = vmatpush1.msra.mxu0 0.0
    %1239 = vmatprep.subr.mxu0 0.0
    %1240 = vmatpush1.msra.mxu0 0.0
    %1241 = vmatprep.subr.mxu0 0.0
    %1242 = vmatpush1.msra.mxu0 0.0
    %1243 = vmatprep.subr.mxu0 0.0
    %1244 = vmatpush1.msra.mxu0 0.0
    %1245 = vmatprep.subr.mxu0 0.0
    %1246 = vmatpush1.msra.mxu0 0.0
    %1247 = vmatprep.subr.mxu0 0.0
    %1248 = vmatpush1.msra.mxu0 0.0
    %1249 = vmatprep.subr.mxu0 0.0
    %1250 = vmatpush1.msra.mxu0 0.0
    %1251 = vmatprep.subr.mxu0 0.0
    %1252 = vmatpush1.msra.mxu0 0.0
    %1253 = vmatprep.subr.mxu0 0.0
    %1254 = vmatpush1.msra.mxu0 0.0
    %1255 = vmatprep.subr.mxu0 0.0
    %1256 = vmatpush1.msra.mxu0 0.0
    %1257 = vmatprep.subr.mxu0 0.0
    %1258 = vmatpush1.msra.mxu0 0.0
    %1259 = vmatprep.subr.mxu0 0.0
    %1260 = vmatpush1.msra.mxu0 0.0
    %1261 = vmatprep.subr.mxu0 0.0
    %1262 = vmatpush1.msra.mxu0 0.0
    %1263 = vmatprep.subr.mxu0 0.0
    %1264 = vmatpush1.msra.mxu0 0.0
    %1265 = vmatprep.subr.mxu0 0.0
    %1266 = vmatpush1.msra.mxu0 0.0
    %1267 = vmatprep.subr.mxu0 0.0
    %1268 = vmatpush1.msra.mxu0 0.0
    %1269 = vmatprep.subr.mxu0 0.0
    %1270 = vmatpush1.msra.mxu0 0.0
    %1271 = vmatprep.subr.mxu0 0.0
    %1272 = vmatpush1.msra.mxu0 0.0
    %1273 = vmatprep.subr.mxu0 0.0
    %1274 = vmatpush1.msra.mxu0 0.0
    %1275 = vmatprep.subr.mxu0 0.0
    %1276 = vmatpush1.msra.mxu0 0.0
    %1277 = vmatprep.subr.mxu0 0.0
    %1278 = vmatpush1.msra.mxu0 0.0
    %1279 = vmatprep.subr.mxu0 0.0
    %1280 = vmatpush1.msra.mxu0 0.0
    %1281 = vmatprep.subr.mxu0 0.0
    %1282 = vmatpush1.msra.mxu0 0.0
    %1283 = vmatprep.subr.mxu0 0.0
    %1284 = vmatpush1.msra.mxu0 0.0
    %1285 = vmatprep.subr.mxu0 0.0
    %1286 = vmatpush1.msra.mxu0 0.0
    %1287 = vmatprep.subr.mxu0 0.0
    %1288 = vmatpush1.msra.mxu0 0.0
    %1289 = vmatprep.subr.mxu0 0.0
    %1290 = vmatpush1.msra.mxu0 0.0
    %1291 = vmatprep.subr.mxu0 0.0
    %1292 = vmatpush1.msra.mxu0 0.0
    %1293 = vmatprep.mubr.f32.mxu0 0.0
    %1294 = vmatmul.mubr.f32.gmra.mrb[0].mxu0 %v1227
    %v1295 = vpop.f32.mrb[0].mxu0
    %v1296 = vadd.f32 0.0, %v1295
    %v1297 = vpop.f32.mrb[0].mxu0
    %1298 = vdwg.mxu0
    %v1300 = vrot.slane %v1296, 7
    %v1302 = vadd.f32 %v1128, %v1300
    %v1303 = vxor.u32 %v1302, 2147483648
    %v1304 = vmul.f32 %v1303, 1.442695
    %v1305 = vpow.pop %v1304
    %v1306 = vadd.f32 %v1305, 1.0
    %v1307 = vrcp.pop %v1306
    %v1308 = vmul.f32 1.0, %v1307
    %v1309 = vtanh.pop %v1302
    %v1311 = vrot.slane %v1217, 7
    %v1313 = vmul.f32 %v1308, %v1311
    %1315 = vrot.lane.b32.xlu0 %v1309, 64
    %v1316 = vpop.permute.xlu0 %1315
    %v1318 = vmul.f32 %v1308, %v1316
    %1320 = vrot.lane.b32.xlu0 %v1318, 32
    %v1321 = vpop.permute.xlu0 %1320
    %v1323 = vadd.f32 %v1313, %v1321
    %v1324 = vtanh.pop %v1323
    %1326 = vrot.lane.b32.xlu0 %v1324, 64
    %v1327 = vpop.permute.xlu0 %1326
    %v1329 = vmul.f32 %v1308, %v1327
    %v1331 = vrot.slane %v1329, 1
    %1332 = vrot.lane.b32.xlu0 %v1331, 32
    %v1333 = vpop.permute.xlu0 %1332
    %v1334 = vsel %vm163, %v1333, 0
    %1336 = vmatprep.subr.mxu0 0.0
    %1337 = vmatpush1.msra.mxu0 %v1040
    %1338 = vmatprep.subr.mxu0 0.0
    %1339 = vmatpush1.msra.mxu0 %v1041
    %1340 = vmatprep.subr.mxu0 0.0
    %1341 = vmatpush1.msra.mxu0 %v1042
    %1342 = vmatprep.subr.mxu0 0.0
    %1343 = vmatpush1.msra.mxu0 %v1043
    %1344 = vmatprep.subr.mxu0 0.0
    %1345 = vmatpush1.msra.mxu0 0.0
    %1346 = vmatprep.subr.mxu0 0.0
    %1347 = vmatpush1.msra.mxu0 0.0
    %1348 = vmatprep.subr.mxu0 0.0
    %1349 = vmatpush1.msra.mxu0 0.0
    %1350 = vmatprep.subr.mxu0 0.0
    %1351 = vmatpush1.msra.mxu0 0.0
    %1352 = vmatprep.subr.mxu0 0.0
    %1353 = vmatpush1.msra.mxu0 0.0
    %1354 = vmatprep.subr.mxu0 0.0
    %1355 = vmatpush1.msra.mxu0 0.0
    %1356 = vmatprep.subr.mxu0 0.0
    %1357 = vmatpush1.msra.mxu0 0.0
    %1358 = vmatprep.subr.mxu0 0.0
    %1359 = vmatpush1.msra.mxu0 0.0
    %1360 = vmatprep.subr.mxu0 0.0
    %1361 = vmatpush1.msra.mxu0 0.0
    %1362 = vmatprep.subr.mxu0 0.0
    %1363 = vmatpush1.msra.mxu0 0.0
    %1364 = vmatprep.subr.mxu0 0.0
    %1365 = vmatpush1.msra.mxu0 0.0
    %1366 = vmatprep.subr.mxu0 0.0
    %1367 = vmatpush1.msra.mxu0 0.0
    %1368 = vmatprep.subr.mxu0 0.0
    %1369 = vmatpush1.msra.mxu0 0.0
    %1370 = vmatprep.subr.mxu0 0.0
    %1371 = vmatpush1.msra.mxu0 0.0
    %1372 = vmatprep.subr.mxu0 0.0
    %1373 = vmatpush1.msra.mxu0 0.0
    %1374 = vmatprep.subr.mxu0 0.0
    %1375 = vmatpush1.msra.mxu0 0.0
    %1376 = vmatprep.subr.mxu0 0.0
    %1377 = vmatpush1.msra.mxu0 0.0
    %1378 = vmatprep.subr.mxu0 0.0
    %1379 = vmatpush1.msra.mxu0 0.0
    %1380 = vmatprep.subr.mxu0 0.0
    %1381 = vmatpush1.msra.mxu0 0.0
    %1382 = vmatprep.subr.mxu0 0.0
    %1383 = vmatpush1.msra.mxu0 0.0
    %1384 = vmatprep.subr.mxu0 0.0
    %1385 = vmatpush1.msra.mxu0 0.0
    %1386 = vmatprep.subr.mxu0 0.0
    %1387 = vmatpush1.msra.mxu0 0.0
    %1388 = vmatprep.subr.mxu0 0.0
    %1389 = vmatpush1.msra.mxu0 0.0
    %1390 = vmatprep.subr.mxu0 0.0
    %1391 = vmatpush1.msra.mxu0 0.0
    %1392 = vmatprep.subr.mxu0 0.0
    %1393 = vmatpush1.msra.mxu0 0.0
    %1394 = vmatprep.subr.mxu0 0.0
    %1395 = vmatpush1.msra.mxu0 0.0
    %1396 = vmatprep.subr.mxu0 0.0
    %1397 = vmatpush1.msra.mxu0 0.0
    %1398 = vmatprep.subr.mxu0 0.0
    %1399 = vmatpush1.msra.mxu0 0.0
    %1400 = vmatprep.mubr.f32.mxu0 0.0
    %1401 = vmatmul.mubr.f32.gmra.mrb[0].mxu0 %v1334
    %v1402 = vpop.f32.mrb[0].mxu0
    %v1403 = vadd.f32 0.0, %v1402
    %v1404 = vpop.f32.mrb[0].mxu0
    %1405 = vdwg.mxu0
    %v1407 = vrot.slane %v1403, 6
    %v1409 = vadd.f32 %v1128, %v1407
    %v1410 = vxor.u32 %v1409, 2147483648
    %v1411 = vmul.f32 %v1410, 1.442695
    %v1412 = vpow.pop %v1411
    %v1413 = vadd.f32 %v1412, 1.0
    %v1414 = vrcp.pop %v1413
    %v1415 = vmul.f32 1.0, %v1414
    %v1416 = vtanh.pop %v1409
    %v1418 = vrot.slane %v1323, 7
    %v1420 = vmul.f32 %v1415, %v1418
    %1422 = vrot.lane.b32.xlu0 %v1416, 64
    %v1423 = vpop.permute.xlu0 %1422
    %v1425 = vmul.f32 %v1415, %v1423
    %1427 = vrot.lane.b32.xlu0 %v1425, 32
    %v1428 = vpop.permute.xlu0 %1427
    %v1430 = vadd.f32 %v1420, %v1428
    %v1431 = vtanh.pop %v1430
    %1433 = vrot.lane.b32.xlu0 %v1431, 64
    %v1434 = vpop.permute.xlu0 %1433
    %v1436 = vmul.f32 %v1415, %v1434
    %v1438 = vrot.slane %v1436, 2
    %1439 = vrot.lane.b32.xlu0 %v1438, 32
    %v1440 = vpop.permute.xlu0 %1439
    %v1441 = vsel %vm163, %v1440, 0
    %1443 = vmatprep.subr.mxu0 0.0
    %1444 = vmatpush1.msra.mxu0 %v1040
    %1445 = vmatprep.subr.mxu0 0.0
    %1446 = vmatpush1.msra.mxu0 %v1041
    %1447 = vmatprep.subr.mxu0 0.0
    %1448 = vmatpush1.msra.mxu0 %v1042
    %1449 = vmatprep.subr.mxu0 0.0
    %1450 = vmatpush1.msra.mxu0 %v1043
    %1451 = vmatprep.subr.mxu0 0.0
    %1452 = vmatpush1.msra.mxu0 0.0
    %1453 = vmatprep.subr.mxu0 0.0
    %1454 = vmatpush1.msra.mxu0 0.0
    %1455 = vmatprep.subr.mxu0 0.0
    %1456 = vmatpush1.msra.mxu0 0.0
    %1457 = vmatprep.subr.mxu0 0.0
    %1458 = vmatpush1.msra.mxu0 0.0
    %1459 = vmatprep.subr.mxu0 0.0
    %1460 = vmatpush1.msra.mxu0 0.0
    %1461 = vmatprep.subr.mxu0 0.0
    %1462 = vmatpush1.msra.mxu0 0.0
    %1463 = vmatprep.subr.mxu0 0.0
    %1464 = vmatpush1.msra.mxu0 0.0
    %1465 = vmatprep.subr.mxu0 0.0
    %1466 = vmatpush1.msra.mxu0 0.0
    %1467 = vmatprep.subr.mxu0 0.0
    %1468 = vmatpush1.msra.mxu0 0.0
    %1469 = vmatprep.subr.mxu0 0.0
    %1470 = vmatpush1.msra.mxu0 0.0
    %1471 = vmatprep.subr.mxu0 0.0
    %1472 = vmatpush1.msra.mxu0 0.0
    %1473 = vmatprep.subr.mxu0 0.0
    %1474 = vmatpush1.msra.mxu0 0.0
    %1475 = vmatprep.subr.mxu0 0.0
    %1476 = vmatpush1.msra.mxu0 0.0
    %1477 = vmatprep.subr.mxu0 0.0
    %1478 = vmatpush1.msra.mxu0 0.0
    %1479 = vmatprep.subr.mxu0 0.0
    %1480 = vmatpush1.msra.mxu0 0.0
    %1481 = vmatprep.subr.mxu0 0.0
    %1482 = vmatpush1.msra.mxu0 0.0
    %1483 = vmatprep.subr.mxu0 0.0
    %1484 = vmatpush1.msra.mxu0 0.0
    %1485 = vmatprep.subr.mxu0 0.0
    %1486 = vmatpush1.msra.mxu0 0.0
    %1487 = vmatprep.subr.mxu0 0.0
    %1488 = vmatpush1.msra.mxu0 0.0
    %1489 = vmatprep.subr.mxu0 0.0
    %1490 = vmatpush1.msra.mxu0 0.0
    %1491 = vmatprep.subr.mxu0 0.0
    %1492 = vmatpush1.msra.mxu0 0.0
    %1493 = vmatprep.subr.mxu0 0.0
    %1494 = vmatpush1.msra.mxu0 0.0
    %1495 = vmatprep.subr.mxu0 0.0
    %1496 = vmatpush1.msra.mxu0 0.0
    %1497 = vmatprep.subr.mxu0 0.0
    %1498 = vmatpush1.msra.mxu0 0.0
    %1499 = vmatprep.subr.mxu0 0.0
    %1500 = vmatpush1.msra.mxu0 0.0
    %1501 = vmatprep.subr.mxu0 0.0
    %1502 = vmatpush1.msra.mxu0 0.0
    %1503 = vmatprep.subr.mxu0 0.0
    %1504 = vmatpush1.msra.mxu0 0.0
    %1505 = vmatprep.subr.mxu0 0.0
    %1506 = vmatpush1.msra.mxu0 0.0
    %1507 = vmatprep.mubr.f32.mxu0 0.0
    %1508 = vmatmul.mubr.f32.gmra.mrb[0].mxu0 %v1441
    %v1509 = vpop.f32.mrb[0].mxu0
    %v1510 = vadd.f32 0.0, %v1509
    %v1511 = vpop.f32.mrb[0].mxu0
    %1512 = vdwg.mxu0
    %v1514 = vrot.slane %v1510, 5
    %v1516 = vadd.f32 %v1128, %v1514
    %v1517 = vxor.u32 %v1516, 2147483648
    %v1518 = vmul.f32 %v1517, 1.442695
    %v1519 = vpow.pop %v1518
    %v1520 = vadd.f32 %v1519, 1.0
    %v1521 = vrcp.pop %v1520
    %v1522 = vmul.f32 1.0, %v1521
    %v1523 = vtanh.pop %v1516
    %v1525 = vrot.slane %v1430, 7
    %v1527 = vmul.f32 %v1522, %v1525
    %1529 = vrot.lane.b32.xlu0 %v1523, 64
    %v1530 = vpop.permute.xlu0 %1529
    %v1532 = vmul.f32 %v1522, %v1530
    %1534 = vrot.lane.b32.xlu0 %v1532, 32
    %v1535 = vpop.permute.xlu0 %1534
    %v1537 = vadd.f32 %v1527, %v1535
    %v1538 = vtanh.pop %v1537
    %1540 = vrot.lane.b32.xlu0 %v1538, 64
    %v1541 = vpop.permute.xlu0 %1540
    %v1543 = vmul.f32 %v1522, %v1541
    %v1545 = vrot.slane %v1543, 3
    %1546 = vrot.lane.b32.xlu0 %v1545, 32
    %v1547 = vpop.permute.xlu0 %1546
    %v1548 = vsel %vm163, %v1547, 0
    %1550 = vmatprep.subr.mxu0 0.0
    %1551 = vmatpush1.msra.mxu0 %v1040
    %1552 = vmatprep.subr.mxu0 0.0
    %1553 = vmatpush1.msra.mxu0 %v1041
    %1554 = vmatprep.subr.mxu0 0.0
    %1555 = vmatpush1.msra.mxu0 %v1042
    %1556 = vmatprep.subr.mxu0 0.0
    %1557 = vmatpush1.msra.mxu0 %v1043
    %1558 = vmatprep.subr.mxu0 0.0
    %1559 = vmatpush1.msra.mxu0 0.0
    %1560 = vmatprep.subr.mxu0 0.0
    %1561 = vmatpush1.msra.mxu0 0.0
    %1562 = vmatprep.subr.mxu0 0.0
    %1563 = vmatpush1.msra.mxu0 0.0
    %1564 = vmatprep.subr.mxu0 0.0
    %1565 = vmatpush1.msra.mxu0 0.0
    %1566 = vmatprep.subr.mxu0 0.0
    %1567 = vmatpush1.msra.mxu0 0.0
    %1568 = vmatprep.subr.mxu0 0.0
    %1569 = vmatpush1.msra.mxu0 0.0
    %1570 = vmatprep.subr.mxu0 0.0
    %1571 = vmatpush1.msra.mxu0 0.0
    %1572 = vmatprep.subr.mxu0 0.0
    %1573 = vmatpush1.msra.mxu0 0.0
    %1574 = vmatprep.subr.mxu0 0.0
    %1575 = vmatpush1.msra.mxu0 0.0
    %1576 = vmatprep.subr.mxu0 0.0
    %1577 = vmatpush1.msra.mxu0 0.0
    %1578 = vmatprep.subr.mxu0 0.0
    %1579 = vmatpush1.msra.mxu0 0.0
    %1580 = vmatprep.subr.mxu0 0.0
    %1581 = vmatpush1.msra.mxu0 0.0
    %1582 = vmatprep.subr.mxu0 0.0
    %1583 = vmatpush1.msra.mxu0 0.0
    %1584 = vmatprep.subr.mxu0 0.0
    %1585 = vmatpush1.msra.mxu0 0.0
    %1586 = vmatprep.subr.mxu0 0.0
    %1587 = vmatpush1.msra.mxu0 0.0
    %1588 = vmatprep.subr.mxu0 0.0
    %1589 = vmatpush1.msra.mxu0 0.0
    %1590 = vmatprep.subr.mxu0 0.0
    %1591 = vmatpush1.msra.mxu0 0.0
    %1592 = vmatprep.subr.mxu0 0.0
    %1593 = vmatpush1.msra.mxu0 0.0
    %1594 = vmatprep.subr.mxu0 0.0
    %1595 = vmatpush1.msra.mxu0 0.0
    %1596 = vmatprep.subr.mxu0 0.0
    %1597 = vmatpush1.msra.mxu0 0.0
    %1598 = vmatprep.subr.mxu0 0.0
    %1599 = vmatpush1.msra.mxu0 0.0
    %1600 = vmatprep.subr.mxu0 0.0
    %1601 = vmatpush1.msra.mxu0 0.0
    %1602 = vmatprep.subr.mxu0 0.0
    %1603 = vmatpush1.msra.mxu0 0.0
    %1604 = vmatprep.subr.mxu0 0.0
    %1605 = vmatpush1.msra.mxu0 0.0
    %1606 = vmatprep.subr.mxu0 0.0
    %1607 = vmatpush1.msra.mxu0 0.0
    %1608 = vmatprep.subr.mxu0 0.0
    %1609 = vmatpush1.msra.mxu0 0.0
    %1610 = vmatprep.subr.mxu0 0.0
    %1611 = vmatpush1.msra.mxu0 0.0
    %1612 = vmatprep.subr.mxu0 0.0
    %1613 = vmatpush1.msra.mxu0 0.0
    %1614 = vmatprep.mubr.f32.mxu0 0.0
    %1615 = vmatmul.mubr.f32.gmra.mrb[0].mxu0 %v1548
    %v1616 = vpop.f32.mrb[0].mxu0
    %v1617 = vadd.f32 0.0, %v1616
    %v1618 = vpop.f32.mrb[0].mxu0
    %1619 = vdwg.mxu0
    %v1621 = vrot.slane %v1617, 4
    %v1623 = vadd.f32 %v1128, %v1621
    %v1624 = vxor.u32 %v1623, 2147483648
    %v1625 = vmul.f32 %v1624, 1.442695
    %v1626 = vpow.pop %v1625
    %v1627 = vadd.f32 %v1626, 1.0
    %v1628 = vrcp.pop %v1627
    %v1629 = vmul.f32 1.0, %v1628
    %v1630 = vtanh.pop %v1623
    %v1632 = vrot.slane %v1537, 7
    %v1634 = vmul.f32 %v1629, %v1632
    %1636 = vrot.lane.b32.xlu0 %v1630, 64
    %v1637 = vpop.permute.xlu0 %1636
    %v1639 = vmul.f32 %v1629, %v1637
    %1641 = vrot.lane.b32.xlu0 %v1639, 32
    %v1642 = vpop.permute.xlu0 %1641
    %v1644 = vadd.f32 %v1634, %v1642
    %v1645 = vtanh.pop %v1644
    %1647 = vrot.lane.b32.xlu0 %v1645, 64
    %v1648 = vpop.permute.xlu0 %1647
    %v1650 = vmul.f32 %v1629, %v1648
    %v1652 = vrot.slane %v1650, 4
    %1653 = vrot.lane.b32.xlu0 %v1652, 32
    %v1654 = vpop.permute.xlu0 %1653
    %v1655 = vsel %vm163, %v1654, 0
    %1657 = vmatprep.subr.mxu0 0.0
    %1658 = vmatpush1.msra.mxu0 %v1040
    %1659 = vmatprep.subr.mxu0 0.0
    %1660 = vmatpush1.msra.mxu0 %v1041
    %1661 = vmatprep.subr.mxu0 0.0
    %1662 = vmatpush1.msra.mxu0 %v1042
    %1663 = vmatprep.subr.mxu0 0.0
    %1664 = vmatpush1.msra.mxu0 %v1043
    %1665 = vmatprep.subr.mxu0 0.0
    %1666 = vmatpush1.msra.mxu0 0.0
    %1667 = vmatprep.subr.mxu0 0.0
    %1668 = vmatpush1.msra.mxu0 0.0
    %1669 = vmatprep.subr.mxu0 0.0
    %1670 = vmatpush1.msra.mxu0 0.0
    %1671 = vmatprep.subr.mxu0 0.0
    %1672 = vmatpush1.msra.mxu0 0.0
    %1673 = vmatprep.subr.mxu0 0.0
    %1674 = vmatpush1.msra.mxu0 0.0
    %1675 = vmatprep.subr.mxu0 0.0
    %1676 = vmatpush1.msra.mxu0 0.0
    %1677 = vmatprep.subr.mxu0 0.0
    %1678 = vmatpush1.msra.mxu0 0.0
    %1679 = vmatprep.subr.mxu0 0.0
    %1680 = vmatpush1.msra.mxu0 0.0
    %1681 = vmatprep.subr.mxu0 0.0
    %1682 = vmatpush1.msra.mxu0 0.0
    %1683 = vmatprep.subr.mxu0 0.0
    %1684 = vmatpush1.msra.mxu0 0.0
    %1685 = vmatprep.subr.mxu0 0.0
    %1686 = vmatpush1.msra.mxu0 0.0
    %1687 = vmatprep.subr.mxu0 0.0
    %1688 = vmatpush1.msra.mxu0 0.0
    %1689 = vmatprep.subr.mxu0 0.0
    %1690 = vmatpush1.msra.mxu0 0.0
    %1691 = vmatprep.subr.mxu0 0.0
    %1692 = vmatpush1.msra.mxu0 0.0
    %1693 = vmatprep.subr.mxu0 0.0
    %1694 = vmatpush1.msra.mxu0 0.0
    %1695 = vmatprep.subr.mxu0 0.0
    %1696 = vmatpush1.msra.mxu0 0.0
    %1697 = vmatprep.subr.mxu0 0.0
    %1698 = vmatpush1.msra.mxu0 0.0
    %1699 = vmatprep.subr.mxu0 0.0
    %1700 = vmatpush1.msra.mxu0 0.0
    %1701 = vmatprep.subr.mxu0 0.0
    %1702 = vmatpush1.msra.mxu0 0.0
    %1703 = vmatprep.subr.mxu0 0.0
    %1704 = vmatpush1.msra.mxu0 0.0
    %1705 = vmatprep.subr.mxu0 0.0
    %1706 = vmatpush1.msra.mxu0 0.0
    %1707 = vmatprep.subr.mxu0 0.0
    %1708 = vmatpush1.msra.mxu0 0.0
    %1709 = vmatprep.subr.mxu0 0.0
    %1710 = vmatpush1.msra.mxu0 0.0
    %1711 = vmatprep.subr.mxu0 0.0
    %1712 = vmatpush1.msra.mxu0 0.0
    %1713 = vmatprep.subr.mxu0 0.0
    %1714 = vmatpush1.msra.mxu0 0.0
    %1715 = vmatprep.subr.mxu0 0.0
    %1716 = vmatpush1.msra.mxu0 0.0
    %1717 = vmatprep.subr.mxu0 0.0
    %1718 = vmatpush1.msra.mxu0 0.0
    %1719 = vmatprep.subr.mxu0 0.0
    %1720 = vmatpush1.msra.mxu0 0.0
    %1721 = vmatprep.mubr.f32.mxu0 0.0
    %1722 = vmatmul.mubr.f32.gmra.mrb[0].mxu0 %v1655
    %v1723 = vpop.f32.mrb[0].mxu0
    %v1724 = vadd.f32 0.0, %v1723
    %v1725 = vpop.f32.mrb[0].mxu0
    %1726 = vdwg.mxu0
    %v1728 = vrot.slane %v1724, 3
    %v1730 = vadd.f32 %v1128, %v1728
    %v1731 = vxor.u32 %v1730, 2147483648
    %v1732 = vmul.f32 %v1731, 1.442695
    %v1733 = vpow.pop %v1732
    %v1734 = vadd.f32 %v1733, 1.0
    %v1735 = vrcp.pop %v1734
    %v1736 = vmul.f32 1.0, %v1735
    %v1737 = vtanh.pop %v1730
    %v1739 = vrot.slane %v1644, 7
    %v1741 = vmul.f32 %v1736, %v1739
    %1743 = vrot.lane.b32.xlu0 %v1737, 64
    %v1744 = vpop.permute.xlu0 %1743
    %v1746 = vmul.f32 %v1736, %v1744
    %1748 = vrot.lane.b32.xlu0 %v1746, 32
    %v1749 = vpop.permute.xlu0 %1748
    %v1751 = vadd.f32 %v1741, %v1749
    %v1752 = vtanh.pop %v1751
    %1754 = vrot.lane.b32.xlu0 %v1752, 64
    %v1755 = vpop.permute.xlu0 %1754
    %v1757 = vmul.f32 %v1736, %v1755
    %v1759 = vrot.slane %v1757, 5
    %1760 = vrot.lane.b32.xlu0 %v1759, 32
    %v1761 = vpop.permute.xlu0 %1760
    %v1762 = vsel %vm163, %v1761, 0
    %1764 = vmatprep.subr.mxu0 0.0
    %1765 = vmatpush1.msra.mxu0 %v1040
    %1766 = vmatprep.subr.mxu0 0.0
    %1767 = vmatpush1.msra.mxu0 %v1041
    %1768 = vmatprep.subr.mxu0 0.0
    %1769 = vmatpush1.msra.mxu0 %v1042
    %1770 = vmatprep.subr.mxu0 0.0
    %1771 = vmatpush1.msra.mxu0 %v1043
    %1772 = vmatprep.subr.mxu0 0.0
    %1773 = vmatpush1.msra.mxu0 0.0
    %1774 = vmatprep.subr.mxu0 0.0
    %1775 = vmatpush1.msra.mxu0 0.0
    %1776 = vmatprep.subr.mxu0 0.0
    %1777 = vmatpush1.msra.mxu0 0.0
    %1778 = vmatprep.subr.mxu0 0.0
    %1779 = vmatpush1.msra.mxu0 0.0
    %1780 = vmatprep.subr.mxu0 0.0
    %1781 = vmatpush1.msra.mxu0 0.0
    %1782 = vmatprep.subr.mxu0 0.0
    %1783 = vmatpush1.msra.mxu0 0.0
    %1784 = vmatprep.subr.mxu0 0.0
    %1785 = vmatpush1.msra.mxu0 0.0
    %1786 = vmatprep.subr.mxu0 0.0
    %1787 = vmatpush1.msra.mxu0 0.0
    %1788 = vmatprep.subr.mxu0 0.0
    %1789 = vmatpush1.msra.mxu0 0.0
    %1790 = vmatprep.subr.mxu0 0.0
    %1791 = vmatpush1.msra.mxu0 0.0
    %1792 = vmatprep.subr.mxu0 0.0
    %1793 = vmatpush1.msra.mxu0 0.0
    %1794 = vmatprep.subr.mxu0 0.0
    %1795 = vmatpush1.msra.mxu0 0.0
    %1796 = vmatprep.subr.mxu0 0.0
    %1797 = vmatpush1.msra.mxu0 0.0
    %1798 = vmatprep.subr.mxu0 0.0
    %1799 = vmatpush1.msra.mxu0 0.0
    %1800 = vmatprep.subr.mxu0 0.0
    %1801 = vmatpush1.msra.mxu0 0.0
    %1802 = vmatprep.subr.mxu0 0.0
    %1803 = vmatpush1.msra.mxu0 0.0
    %1804 = vmatprep.subr.mxu0 0.0
    %1805 = vmatpush1.msra.mxu0 0.0
    %1806 = vmatprep.subr.mxu0 0.0
    %1807 = vmatpush1.msra.mxu0 0.0
    %1808 = vmatprep.subr.mxu0 0.0
    %1809 = vmatpush1.msra.mxu0 0.0
    %1810 = vmatprep.subr.mxu0 0.0
    %1811 = vmatpush1.msra.mxu0 0.0
    %1812 = vmatprep.subr.mxu0 0.0
    %1813 = vmatpush1.msra.mxu0 0.0
    %1814 = vmatprep.subr.mxu0 0.0
    %1815 = vmatpush1.msra.mxu0 0.0
    %1816 = vmatprep.subr.mxu0 0.0
    %1817 = vmatpush1.msra.mxu0 0.0
    %1818 = vmatprep.subr.mxu0 0.0
    %1819 = vmatpush1.msra.mxu0 0.0
    %1820 = vmatprep.subr.mxu0 0.0
    %1821 = vmatpush1.msra.mxu0 0.0
    %1822 = vmatprep.subr.mxu0 0.0
    %1823 = vmatpush1.msra.mxu0 0.0
    %1824 = vmatprep.subr.mxu0 0.0
    %1825 = vmatpush1.msra.mxu0 0.0
    %1826 = vmatprep.subr.mxu0 0.0
    %1827 = vmatpush1.msra.mxu0 0.0
    %1828 = vmatprep.mubr.f32.mxu0 0.0
    %1829 = vmatmul.mubr.f32.gmra.mrb[0].mxu0 %v1762
    %v1830 = vpop.f32.mrb[0].mxu0
    %v1831 = vadd.f32 0.0, %v1830
    %v1832 = vpop.f32.mrb[0].mxu0
    %1833 = vdwg.mxu0
    %v1835 = vrot.slane %v1831, 2
    %v1837 = vadd.f32 %v1128, %v1835
    %v1838 = vxor.u32 %v1837, 2147483648
    %v1839 = vmul.f32 %v1838, 1.442695
    %v1840 = vpow.pop %v1839
    %v1841 = vadd.f32 %v1840, 1.0
    %v1842 = vrcp.pop %v1841
    %v1843 = vmul.f32 1.0, %v1842
    %v1844 = vtanh.pop %v1837
    %v1846 = vrot.slane %v1751, 7
    %v1848 = vmul.f32 %v1843, %v1846
    %1850 = vrot.lane.b32.xlu0 %v1844, 64
    %v1851 = vpop.permute.xlu0 %1850
    %v1853 = vmul.f32 %v1843, %v1851
    %1855 = vrot.lane.b32.xlu0 %v1853, 32
    %v1856 = vpop.permute.xlu0 %1855
    %v1858 = vadd.f32 %v1848, %v1856
    %v1859 = vtanh.pop %v1858
    %1861 = vrot.lane.b32.xlu0 %v1859, 64
    %v1862 = vpop.permute.xlu0 %1861
    %v1864 = vmul.f32 %v1843, %v1862
    %v1866 = vrot.slane %v1864, 6
    %1867 = vrot.lane.b32.xlu0 %v1866, 32
    %v1868 = vpop.permute.xlu0 %1867
    %v1869 = vsel %vm163, %v1868, 0
    %1871 = vmatprep.subr.mxu0 0.0
    %1872 = vmatpush1.msra.mxu0 %v1040
    %1873 = vmatprep.subr.mxu0 0.0
    %1874 = vmatpush1.msra.mxu0 %v1041
    %1875 = vmatprep.subr.mxu0 0.0
    %1876 = vmatpush1.msra.mxu0 %v1042
    %1877 = vmatprep.subr.mxu0 0.0
    %1878 = vmatpush1.msra.mxu0 %v1043
    %1879 = vmatprep.subr.mxu0 0.0
    %1880 = vmatpush1.msra.mxu0 0.0
    %1881 = vmatprep.subr.mxu0 0.0
    %1882 = vmatpush1.msra.mxu0 0.0
    %1883 = vmatprep.subr.mxu0 0.0
    %1884 = vmatpush1.msra.mxu0 0.0
    %1885 = vmatprep.subr.mxu0 0.0
    %1886 = vmatpush1.msra.mxu0 0.0
    %1887 = vmatprep.subr.mxu0 0.0
    %1888 = vmatpush1.msra.mxu0 0.0
    %1889 = vmatprep.subr.mxu0 0.0
    %1890 = vmatpush1.msra.mxu0 0.0
    %1891 = vmatprep.subr.mxu0 0.0
    %1892 = vmatpush1.msra.mxu0 0.0
    %1893 = vmatprep.subr.mxu0 0.0
    %1894 = vmatpush1.msra.mxu0 0.0
    %1895 = vmatprep.subr.mxu0 0.0
    %1896 = vmatpush1.msra.mxu0 0.0
    %1897 = vmatprep.subr.mxu0 0.0
    %1898 = vmatpush1.msra.mxu0 0.0
    %1899 = vmatprep.subr.mxu0 0.0
    %1900 = vmatpush1.msra.mxu0 0.0
    %1901 = vmatprep.subr.mxu0 0.0
    %1902 = vmatpush1.msra.mxu0 0.0
    %1903 = vmatprep.subr.mxu0 0.0
    %1904 = vmatpush1.msra.mxu0 0.0
    %1905 = vmatprep.subr.mxu0 0.0
    %1906 = vmatpush1.msra.mxu0 0.0
    %1907 = vmatprep.subr.mxu0 0.0
    %1908 = vmatpush1.msra.mxu0 0.0
    %1909 = vmatprep.subr.mxu0 0.0
    %1910 = vmatpush1.msra.mxu0 0.0
    %1911 = vmatprep.subr.mxu0 0.0
    %1912 = vmatpush1.msra.mxu0 0.0
    %1913 = vmatprep.subr.mxu0 0.0
    %1914 = vmatpush1.msra.mxu0 0.0
    %1915 = vmatprep.subr.mxu0 0.0
    %1916 = vmatpush1.msra.mxu0 0.0
    %1917 = vmatprep.subr.mxu0 0.0
    %1918 = vmatpush1.msra.mxu0 0.0
    %1919 = vmatprep.subr.mxu0 0.0
    %1920 = vmatpush1.msra.mxu0 0.0
    %1921 = vmatprep.subr.mxu0 0.0
    %1922 = vmatpush1.msra.mxu0 0.0
    %1923 = vmatprep.subr.mxu0 0.0
    %1924 = vmatpush1.msra.mxu0 0.0
    %1925 = vmatprep.subr.mxu0 0.0
    %1926 = vmatpush1.msra.mxu0 0.0
    %1927 = vmatprep.subr.mxu0 0.0
    %1928 = vmatpush1.msra.mxu0 0.0
    %1929 = vmatprep.subr.mxu0 0.0
    %1930 = vmatpush1.msra.mxu0 0.0
    %1931 = vmatprep.subr.mxu0 0.0
    %1932 = vmatpush1.msra.mxu0 0.0
    %1933 = vmatprep.subr.mxu0 0.0
    %1934 = vmatpush1.msra.mxu0 0.0
    %1935 = vmatprep.mubr.f32.mxu0 0.0
    %1936 = vmatmul.mubr.f32.gmra.mrb[0].mxu0 %v1869
    %v1937 = vpop.f32.mrb[0].mxu0
    %v1938 = vadd.f32 0.0, %v1937
    %v1939 = vpop.f32.mrb[0].mxu0
    %1940 = vdwg.mxu0
    %v1942 = vrot.slane %v1938, 1
    %v1944 = vadd.f32 %v1128, %v1942
    %v1945 = vxor.u32 %v1944, 2147483648
    %v1946 = vmul.f32 %v1945, 1.442695
    %v1947 = vpow.pop %v1946
    %v1948 = vadd.f32 %v1947, 1.0
    %v1949 = vrcp.pop %v1948
    %v1950 = vmul.f32 1.0, %v1949
    %v1951 = vtanh.pop %v1944
    %v1953 = vrot.slane %v1858, 7
    %v1955 = vmul.f32 %v1950, %v1953
    %1957 = vrot.lane.b32.xlu0 %v1951, 64
    %v1958 = vpop.permute.xlu0 %1957
    %v1960 = vmul.f32 %v1950, %v1958
    %1962 = vrot.lane.b32.xlu0 %v1960, 32
    %v1963 = vpop.permute.xlu0 %1962
    %v1965 = vadd.f32 %v1955, %v1963
    %v1966 = vtanh.pop %v1965
    %1968 = vrot.lane.b32.xlu0 %v1966, 64
    %v1969 = vpop.permute.xlu0 %1968
    %v1971 = vmul.f32 %v1950, %v1969
    %v1972 = vsel %vm1010, %v1223, %v1329
    %v1973 = vsel %vm1012, %v1972, %v1436
    %v1974 = vsel %vm1014, %v1973, %v1543
    %v1975 = vsel %vm87, %v1974, %v1650
    %v1976 = vsel %vm1017, %v1975, %v1757
    %v1977 = vsel %vm1019, %v1976, %v1864
    %v1978 = vsel %vm1021, %v1977, %v1971
    %1980 = vrot.lane.b32.xlu0 %v1978, 32
    %v1981 = vpop.permute.xlu0 %1980
    %1983 = vst.msk [vmem:[#allocation2] sm:$0xff] %vm163, %v1981
    %1985 = vrot.lane.b32.xlu0 %v1971, 32
    %v1986 = vpop.permute.xlu0 %1985
    %1988 = vst.msk [vmem:[#allocation11 - $0x6] sm:$0x80] %vm1032, %v1986
    %1990 = vrot.lane.b32.xlu0 %v1965, 96
    %v1991 = vpop.permute.xlu0 %1990
    %1993 = vst.msk [vmem:[#allocation13 - $0x6] sm:$0x80] %vm1032, %v1991
    %v1994 = vld [vmem:[#allocation2] sm:$0xff]
    %v1995 = vld [vmem:[#allocation9] sm:$0xff]
    %v1996 = vld [vmem:[#allocation9 + $0x8] sm:$0xff]
    %v1997 = vld [vmem:[#allocation9 + $0x10] sm:$0xff]
    %v1998 = vld [vmem:[#allocation9 + $0x18] sm:$0xff]
    %v1999 = vld [vmem:[%s6] sm:$0x1]
    %v2001 = vlaneseq
    %v2002 = vshrl.u32 %v2001, 7
    %v2003 = vsub.s32 0, %v2002
    %v2004 = vrot.slane %v1999, %v2003
    %v2007 = vsel %vm163, %v1994, 0
    %2009 = vmatprep.subr.mxu0 0.0
    %2010 = vmatpush1.msra.mxu0 %v1995
    %2011 = vmatprep.subr.mxu0 0.0
    %2012 = vmatpush1.msra.mxu0 %v1996
    %2013 = vmatprep.subr.mxu0 0.0
    %2014 = vmatpush1.msra.mxu0 %v1997
    %2015 = vmatprep.subr.mxu0 0.0
    %2016 = vmatpush1.msra.mxu0 %v1998
    %2017 = vmatprep.subr.mxu0 0.0
    %2018 = vmatpush1.msra.mxu0 0.0
    %2019 = vmatprep.subr.mxu0 0.0
    %2020 = vmatpush1.msra.mxu0 0.0
    %2021 = vmatprep.subr.mxu0 0.0
    %2022 = vmatpush1.msra.mxu0 0.0
    %2023 = vmatprep.subr.mxu0 0.0
    %2024 = vmatpush1.msra.mxu0 0.0
    %2025 = vmatprep.subr.mxu0 0.0
    %2026 = vmatpush1.msra.mxu0 0.0
    %2027 = vmatprep.subr.mxu0 0.0
    %2028 = vmatpush1.msra.mxu0 0.0
    %2029 = vmatprep.subr.mxu0 0.0
    %2030 = vmatpush1.msra.mxu0 0.0
    %2031 = vmatprep.subr.mxu0 0.0
    %2032 = vmatpush1.msra.mxu0 0.0
    %2033 = vmatprep.subr.mxu0 0.0
    %2034 = vmatpush1.msra.mxu0 0.0
    %2035 = vmatprep.subr.mxu0 0.0
    %2036 = vmatpush1.msra.mxu0 0.0
    %2037 = vmatprep.subr.mxu0 0.0
    %2038 = vmatpush1.msra.mxu0 0.0
    %2039 = vmatprep.subr.mxu0 0.0
    %2040 = vmatpush1.msra.mxu0 0.0
    %2041 = vmatprep.subr.mxu0 0.0
    %2042 = vmatpush1.msra.mxu0 0.0
    %2043 = vmatprep.subr.mxu0 0.0
    %2044 = vmatpush1.msra.mxu0 0.0
    %2045 = vmatprep.subr.mxu0 0.0
    %2046 = vmatpush1.msra.mxu0 0.0
    %2047 = vmatprep.subr.mxu0 0.0
    %2048 = vmatpush1.msra.mxu0 0.0
    %2049 = vmatprep.subr.mxu0 0.0
    %2050 = vmatpush1.msra.mxu0 0.0
    %2051 = vmatprep.subr.mxu0 0.0
    %2052 = vmatpush1.msra.mxu0 0.0
    %2053 = vmatprep.subr.mxu0 0.0
    %2054 = vmatpush1.msra.mxu0 0.0
    %2055 = vmatprep.subr.mxu0 0.0
    %2056 = vmatpush1.msra.mxu0 0.0
    %2057 = vmatprep.subr.mxu0 0.0
    %2058 = vmatpush1.msra.mxu0 0.0
    %2059 = vmatprep.subr.mxu0 0.0
    %2060 = vmatpush1.msra.mxu0 0.0
    %2061 = vmatprep.subr.mxu0 0.0
    %2062 = vmatpush1.msra.mxu0 0.0
    %2063 = vmatprep.subr.mxu0 0.0
    %2064 = vmatpush1.msra.mxu0 0.0
    %2065 = vmatprep.subr.mxu0 0.0
    %2066 = vmatpush1.msra.mxu0 0.0
    %2067 = vmatprep.subr.mxu0 0.0
    %2068 = vmatpush1.msra.mxu0 0.0
    %2069 = vmatprep.subr.mxu0 0.0
    %2070 = vmatpush1.msra.mxu0 0.0
    %2071 = vmatprep.subr.mxu0 0.0
    %2072 = vmatpush1.msra.mxu0 0.0
    %2073 = vmatprep.mubr.f32.mxu0 0.0
    %2074 = vmatmul.mubr.f32.gmra.mrb[0].mxu0 %v2007
    %v2075 = vpop.f32.mrb[0].mxu0
    %v2076 = vadd.f32 %v2004, %v2075
    %v2077 = vpop.f32.mrb[0].mxu0
    %2078 = vdwg.mxu0
    %2079 = vst [vmem:[#allocation10] sm:$0xff] %v2076
    // Predicated region
    $region42: #{tpu_custom_call.1} parent=1 // pred_check
      _
    $region43: #{tpu_custom_call.1} parent=1 // pred_check_branch
      %2081 = sbr.rel (0) target = $region45
    $region44: #{tpu_custom_call.1} parent=1 // pred_region
      %s2083 = ssub.s32 128, 128
      %2084 = vsyncadd [#allocation6], %s2083
      %s2086 = sshll.u32 [#allocation10], 4
      %s2087 = int_to_ptr.vmem [resolvable:$true] %s2086
      %2089 = dma.vmem_to_hbm [thread:$0]  %s2087, 128, %s7, [#allocation6]
    $region45: #{tpu_custom_call.1} parent=1 // pred_fallthru
      _
    // Predicated region
    $region46: #{tpu_custom_call.1} parent=1 // pred_check
      _
    $region47: #{tpu_custom_call.1} parent=1 // pred_check_branch
      %2091 = sbr.rel (0) target = $region49
    $region48: #{tpu_custom_call.1} parent=1 // pred_region
      %s2093 = ssub.s32 32, 32
      %2094 = vsyncadd [#allocation12], %s2093
      %s2096 = sshll.u32 [#allocation11], 4
      %s2097 = int_to_ptr.vmem [resolvable:$true] %s2096
      %2099 = dma.vmem_to_hbm [thread:$0]  %s2097, 32, %s8, [#allocation12]
    $region49: #{tpu_custom_call.1} parent=1 // pred_fallthru
      _
    // Predicated region
    $region50: #{tpu_custom_call.1} parent=1 // pred_check
      _
    $region51: #{tpu_custom_call.1} parent=1 // pred_check_branch
      %2101 = sbr.rel (0) target = $region53
    $region52: #{tpu_custom_call.1} parent=1 // pred_region
      %s2103 = ssub.s32 32, 32
      %2104 = vsyncadd [#allocation12], %s2103
      %s2106 = sshll.u32 [#allocation13], 4
      %s2107 = int_to_ptr.vmem [resolvable:$true] %s2106
      %2109 = dma.vmem_to_hbm [thread:$0]  %s2107, 32, %s9, [#allocation12]
    $region53: #{tpu_custom_call.1} parent=1 // pred_fallthru
      _
    // Predicated region
    $region54: #{tpu_custom_call.1} parent=1 // pred_check
      _
    $region55: #{tpu_custom_call.1} parent=1 // pred_check_branch
      %2111 = sbr.rel (0) target = $region57
    $region56: #{tpu_custom_call.1} parent=1 // pred_region
      %2112 = dma.done [#allocation6], 128
    $region57: #{tpu_custom_call.1} parent=1 // pred_fallthru
      _
    // Predicated region
    $region58: #{tpu_custom_call.1} parent=1 // pred_check
      _
    $region59: #{tpu_custom_call.1} parent=1 // pred_check_branch
      %2114 = sbr.rel (0) target = $region61
    $region60: #{tpu_custom_call.1} parent=1 // pred_region
      %2115 = dma.done [#allocation12], 32
    $region61: #{tpu_custom_call.1} parent=1 // pred_fallthru
      _
    // Predicated region
    $region62: #{tpu_custom_call.1} parent=1 // pred_check
      _
    $region63: #{tpu_custom_call.1} parent=1 // pred_check_branch
      %2117 = sbr.rel (0) target = $region65
    $region64: #{tpu_custom_call.1} parent=1 // pred_region
      %2118 = dma.done [#allocation12], 32
    $region65: #{tpu_custom_call.1} parent=1 // pred_fallthru
      _
    %2119 = vsyncpa [#allocation5], 1
    %2120 = vsyncpa [#allocation8], 1
    %2121 = vsyncpa [#allocation6], 1
    %2122 = vsyncpa [#allocation12], 1

</llo_original>
